<compile_context>
chip_gen: v5e
topology: v5e:2x2
jax: 0.10.0
libtpu: 0.0.40
codegen_flags: <defaults>
</compile_context>

<pallas_src>
import jax
import jax.numpy as jnp
from jax import lax
from jax.experimental import pallas as pl
from jax.experimental.pallas import tpu as pltpu

B_IN, C_IN, H_IN, W_IN = 2, 1, 28, 28          # conv input (C=1, 28x28 forced by fc1)
C_OUT, KH, KW = 10, 3, 3                       # conv filters
H_OUT, W_OUT = H_IN - KH + 1, W_IN - KW + 1    # 26, 26 (stride 1, no pad)
N_PIX = H_OUT * W_OUT                          # 676 (lane-dense trailing dim)
N_TAPS = KH * KW                               # 9
FC_IN = C_OUT * N_PIX                          # 6760
FC_OUT = 10


# ---------------------------------------------------------------------------
# Fused kernel: conv3x3 + ReLU + Linear(6760->10) + Softmax, one image / step
# ---------------------------------------------------------------------------
def fused_kernel(p_ref, cw_ref, cb_ref, wfc_ref, fb_ref, o_ref):
    # p_ref  : (1, 9, 676)    VMEM  -- im2col patches for one image (tap, pixel)
    # cw_ref : (10, 9)        VMEM  -- conv weight (out_ch, tap)
    # cb_ref : (10, 1)        VMEM  -- conv bias (broadcast over lanes)
    # wfc_ref: (10, 10, 676)  VMEM  -- FC weight as (conv_ch, class, pixel)
    # fb_ref : (1, 10)        VMEM  -- FC bias
    # o_ref  : (1, 1, 10)     VMEM  -- softmax probabilities
    p = p_ref[0]                                                      # (9, 676)

    # conv3x3 as one MXU matmul over the 9 taps, then bias + ReLU on the VPU.
    a = jnp.dot(cw_ref[...], p, preferred_element_type=jnp.float32)  # (10, 676)
    a = jnp.maximum(a + cb_ref[...], 0.0)                            # ReLU

    # FC(6760 -> 10): per-conv-channel lane contraction on the MXU, accumulated
    # straight into the (1, 10) logits -- no large intermediate accumulator.
    logits = fb_ref[...]                                              # (1, 10)
    for c in range(C_OUT):
        logits = logits + lax.dot_general(
            a[c:c + 1, :], wfc_ref[c],
            (((1,), (1,)), ((), ())),
            preferred_element_type=jnp.float32)                       # (1, 10)

    # Softmax tail: exp + reciprocal run on the EUP slot.
    m = jnp.max(logits, axis=-1, keepdims=True)
    e = jnp.exp(logits - m)
    denom = jnp.sum(e, axis=-1, keepdims=True)
    o_ref[0] = e * pl.reciprocal(denom, approx=False)


# ---------------------------------------------------------------------------
# Forward pass (host glue: im2col + weight relayout; all compute stays fused)
# ---------------------------------------------------------------------------
@jax.jit
def abc_net_forward(x_nchw, params):
    conv_w, conv_b, fc_w, fc_b = params
    B = x_nchw.shape[0]
    x_hw = x_nchw[:, 0]                                               # (B, 28, 28)

    # Host-side im2col (pure layout plumbing): (B, 9, 676), pixel axis lane-dense.
    patches = jnp.stack(
        [x_hw[:, di:di + H_OUT, dj:dj + W_OUT].reshape(B, N_PIX)
         for di in range(KH) for dj in range(KW)], axis=1)            # (B, 9, 676)

    cw = conv_w.reshape(C_OUT, N_TAPS)                                # (10, 9)
    cb = conv_b.reshape(C_OUT, 1)                                     # (10, 1)
    # (10_cls, 6760) -> (10_cls, 10_cin, 676) -> (10_cin, 10_cls, 676)
    wfc = fc_w.reshape(FC_OUT, C_OUT, N_PIX).transpose(1, 0, 2)
    fb = fc_b.reshape(1, FC_OUT)

    out = pl.pallas_call(
        fused_kernel,
        out_shape=jax.ShapeDtypeStruct((B, 1, FC_OUT), jnp.float32),
        grid=(B,),
        in_specs=[
            pl.BlockSpec((1, N_TAPS, N_PIX), lambda b: (b, 0, 0)),
            pl.BlockSpec((C_OUT, N_TAPS), lambda b: (0, 0)),
            pl.BlockSpec((C_OUT, 1), lambda b: (0, 0)),
            pl.BlockSpec((C_OUT, FC_OUT, N_PIX), lambda b: (0, 0, 0)),
            pl.BlockSpec((1, FC_OUT), lambda b: (0, 0)),
        ],
        out_specs=pl.BlockSpec((1, 1, FC_OUT), lambda b: (b, 0, 0)),
        compiler_params=pltpu.CompilerParams(dimension_semantics=("parallel",)),
    )(patches, cw, cb, wfc, fb)
    return out[:, 0, :]                                               # (B, 10)


def init_params(key):
    k1, k2, k3, k4 = jax.random.split(key, 4)
    conv_w = jax.random.uniform(k1, (C_OUT, C_IN, KH, KW), jnp.float32, -1 / 3, 1 / 3)
    conv_b = jax.random.uniform(k2, (C_OUT,), jnp.float32, -1 / 3, 1 / 3)
    bound = 1.0 / (FC_IN ** 0.5)
    fc_w = jax.random.uniform(k3, (FC_OUT, FC_IN), jnp.float32, -bound, bound)
    fc_b = jax.random.uniform(k4, (FC_OUT,), jnp.float32, -bound, bound)
    return conv_w, conv_b, fc_w, fc_b


def reference_forward(x_nchw, params):
    conv_w, conv_b, fc_w, fc_b = params
    y = lax.conv_general_dilated(
        x_nchw, conv_w, window_strides=(1, 1), padding="VALID",
        dimension_numbers=("NCHW", "OIHW", "NCHW"),
        precision=lax.Precision.HIGHEST)
    y = jnp.maximum(y + conv_b[None, :, None, None], 0.0)
    feat = y.reshape(y.shape[0], -1)
    logits = jnp.dot(feat, fc_w.T, precision=lax.Precision.HIGHEST) + fc_b
    return jax.nn.softmax(logits, axis=1)


if __name__ == "__main__":
    key = jax.random.PRNGKey(0)
    kx, kp = jax.random.split(key)
    x = jax.random.normal(kx, (B_IN, C_IN, H_IN, W_IN), jnp.float32)
    params = init_params(kp)

    out = jax.block_until_ready(abc_net_forward(x, params))
    ref = reference_forward(x, params)

    assert out.shape == (B_IN, FC_OUT)
    # Accumulation order differs (per-channel MXU contractions vs one 6760-wide
    # matmul), so allow 1e-4 on the softmax probabilities.
    assert jnp.allclose(out, ref, atol=1e-4, rtol=1e-4), "mismatch vs JAX reference"

    print("KERNEL_OK")
</pallas_src>

<mosaic_0001>
module attributes {stable_mosaic.version = 11 : i64} {
  func.func @fused_kernel(%arg0: i32, %arg1: memref<1x9x676xf32, #tpu.memory_space<vmem>>, %arg2: memref<10x9xf32, #tpu.memory_space<vmem>>, %arg3: memref<10x1xf32, #tpu.memory_space<vmem>>, %arg4: memref<10x10x676xf32, #tpu.memory_space<vmem>>, %arg5: memref<1x10xf32, #tpu.memory_space<vmem>>, %arg6: memref<1x1x10xf32, #tpu.memory_space<vmem>>) attributes {dimension_semantics = [#tpu.dimension_semantics<parallel>], iteration_bounds = array<i64: 2>, scalar_prefetch = 0 : i64, scratch_operands = 0 : i64, tpu.core_type = #tpu.core_type<tc>, window_params = [{transform_indices = @transform_0, window_bounds = array<i64: 1, 9, 676>}, {pipeline_mode = #tpu.pipeline_mode<synchronous>, transform_indices = @transform_1, window_bounds = array<i64: 10, 9>}, {pipeline_mode = #tpu.pipeline_mode<synchronous>, transform_indices = @transform_2, window_bounds = array<i64: 10, 1>}, {pipeline_mode = #tpu.pipeline_mode<synchronous>, transform_indices = @transform_3, window_bounds = array<i64: 10, 10, 676>}, {pipeline_mode = #tpu.pipeline_mode<synchronous>, transform_indices = @transform_4, window_bounds = array<i64: 1, 10>}, {transform_indices = @transform_5, window_bounds = array<i64: 1, 1, 10>}]} {
    %c0 = arith.constant 0 : index
    %c0_0 = arith.constant 0 : index
    %c0_1 = arith.constant 0 : index
    %0 = vector.load %arg1[%c0, %c0_0, %c0_1] : memref<1x9x676xf32, #tpu.memory_space<vmem>>, vector<1x9x676xf32>
    %1 = vector.shape_cast %0 : vector<1x9x676xf32> to vector<9x676xf32>
    %c0_2 = arith.constant 0 : index
    %c0_3 = arith.constant 0 : index
    %2 = vector.load %arg2[%c0_2, %c0_3] : memref<10x9xf32, #tpu.memory_space<vmem>>, vector<10x9xf32>
    %cst = arith.constant dense<0.000000e+00> : vector<10x676xf32>
    %3 = tpu.matmul %2, %1, %cst {dimension_numbers = #tpu.dot_dimension_numbers<[1], [0], [0], [1], [0, 0, 1, 1], [], []>} : vector<10x9xf32>, vector<9x676xf32>, vector<10x676xf32> -> vector<10x676xf32>
    %c0_4 = arith.constant 0 : index
    %c0_5 = arith.constant 0 : index
    %4 = vector.load %arg3[%c0_4, %c0_5] : memref<10x1xf32, #tpu.memory_space<vmem>>, vector<10x1xf32>
    %5 = vector.broadcast %4 : vector<10x1xf32> to vector<10x676xf32>
    %6 = arith.addf %3, %5 : vector<10x676xf32>
    %cst_6 = arith.constant 0.000000e+00 : f32
    %7 = vector.broadcast %cst_6 : f32 to vector<10x676xf32>
    %8 = arith.maximumf %6, %7 : vector<10x676xf32>
    %c0_7 = arith.constant 0 : index
    %c0_8 = arith.constant 0 : index
    %9 = vector.load %arg5[%c0_7, %c0_8] : memref<1x10xf32, #tpu.memory_space<vmem>>, vector<1x10xf32>
    %10 = vector.extract_strided_slice %8 {offsets = [0, 0], sizes = [1, 676], strides = [1, 1]} : vector<10x676xf32> to vector<1x676xf32>
    %c0_9 = arith.constant 0 : index
    %c0_10 = arith.constant 0 : index
    %c0_11 = arith.constant 0 : index
    %11 = vector.load %arg4[%c0_9, %c0_10, %c0_11] : memref<10x10x676xf32, #tpu.memory_space<vmem>>, vector<1x10x676xf32>
    %12 = vector.shape_cast %11 : vector<1x10x676xf32> to vector<10x676xf32>
    %cst_12 = arith.constant dense<0.000000e+00> : vector<1x10xf32>
    %13 = tpu.matmul %10, %12, %cst_12 {dimension_numbers = #tpu.dot_dimension_numbers<[1], [1], [0], [0], [0, 0, 1, 0], [], []>} : vector<1x676xf32>, vector<10x676xf32>, vector<1x10xf32> -> vector<1x10xf32>
    %14 = arith.addf %9, %13 : vector<1x10xf32>
    %15 = vector.extract_strided_slice %8 {offsets = [1, 0], sizes = [1, 676], strides = [1, 1]} : vector<10x676xf32> to vector<1x676xf32>
    %c1 = arith.constant 1 : index
    %c0_13 = arith.constant 0 : index
    %c0_14 = arith.constant 0 : index
    %16 = vector.load %arg4[%c1, %c0_13, %c0_14] : memref<10x10x676xf32, #tpu.memory_space<vmem>>, vector<1x10x676xf32>
    %17 = vector.shape_cast %16 : vector<1x10x676xf32> to vector<10x676xf32>
    %cst_15 = arith.constant dense<0.000000e+00> : vector<1x10xf32>
    %18 = tpu.matmul %15, %17, %cst_15 {dimension_numbers = #tpu.dot_dimension_numbers<[1], [1], [0], [0], [0, 0, 1, 0], [], []>} : vector<1x676xf32>, vector<10x676xf32>, vector<1x10xf32> -> vector<1x10xf32>
    %19 = arith.addf %14, %18 : vector<1x10xf32>
    %20 = vector.extract_strided_slice %8 {offsets = [2, 0], sizes = [1, 676], strides = [1, 1]} : vector<10x676xf32> to vector<1x676xf32>
    %c2 = arith.constant 2 : index
    %c0_16 = arith.constant 0 : index
    %c0_17 = arith.constant 0 : index
    %21 = vector.load %arg4[%c2, %c0_16, %c0_17] : memref<10x10x676xf32, #tpu.memory_space<vmem>>, vector<1x10x676xf32>
    %22 = vector.shape_cast %21 : vector<1x10x676xf32> to vector<10x676xf32>
    %cst_18 = arith.constant dense<0.000000e+00> : vector<1x10xf32>
    %23 = tpu.matmul %20, %22, %cst_18 {dimension_numbers = #tpu.dot_dimension_numbers<[1], [1], [0], [0], [0, 0, 1, 0], [], []>} : vector<1x676xf32>, vector<10x676xf32>, vector<1x10xf32> -> vector<1x10xf32>
    %24 = arith.addf %19, %23 : vector<1x10xf32>
    %25 = vector.extract_strided_slice %8 {offsets = [3, 0], sizes = [1, 676], strides = [1, 1]} : vector<10x676xf32> to vector<1x676xf32>
    %c3 = arith.constant 3 : index
    %c0_19 = arith.constant 0 : index
    %c0_20 = arith.constant 0 : index
    %26 = vector.load %arg4[%c3, %c0_19, %c0_20] : memref<10x10x676xf32, #tpu.memory_space<vmem>>, vector<1x10x676xf32>
    %27 = vector.shape_cast %26 : vector<1x10x676xf32> to vector<10x676xf32>
    %cst_21 = arith.constant dense<0.000000e+00> : vector<1x10xf32>
    %28 = tpu.matmul %25, %27, %cst_21 {dimension_numbers = #tpu.dot_dimension_numbers<[1], [1], [0], [0], [0, 0, 1, 0], [], []>} : vector<1x676xf32>, vector<10x676xf32>, vector<1x10xf32> -> vector<1x10xf32>
    %29 = arith.addf %24, %28 : vector<1x10xf32>
    %30 = vector.extract_strided_slice %8 {offsets = [4, 0], sizes = [1, 676], strides = [1, 1]} : vector<10x676xf32> to vector<1x676xf32>
    %c4 = arith.constant 4 : index
    %c0_22 = arith.constant 0 : index
    %c0_23 = arith.constant 0 : index
    %31 = vector.load %arg4[%c4, %c0_22, %c0_23] : memref<10x10x676xf32, #tpu.memory_space<vmem>>, vector<1x10x676xf32>
    %32 = vector.shape_cast %31 : vector<1x10x676xf32> to vector<10x676xf32>
    %cst_24 = arith.constant dense<0.000000e+00> : vector<1x10xf32>
    %33 = tpu.matmul %30, %32, %cst_24 {dimension_numbers = #tpu.dot_dimension_numbers<[1], [1], [0], [0], [0, 0, 1, 0], [], []>} : vector<1x676xf32>, vector<10x676xf32>, vector<1x10xf32> -> vector<1x10xf32>
    %34 = arith.addf %29, %33 : vector<1x10xf32>
    %35 = vector.extract_strided_slice %8 {offsets = [5, 0], sizes = [1, 676], strides = [1, 1]} : vector<10x676xf32> to vector<1x676xf32>
    %c5 = arith.constant 5 : index
    %c0_25 = arith.constant 0 : index
    %c0_26 = arith.constant 0 : index
    %36 = vector.load %arg4[%c5, %c0_25, %c0_26] : memref<10x10x676xf32, #tpu.memory_space<vmem>>, vector<1x10x676xf32>
    %37 = vector.shape_cast %36 : vector<1x10x676xf32> to vector<10x676xf32>
    %cst_27 = arith.constant dense<0.000000e+00> : vector<1x10xf32>
    %38 = tpu.matmul %35, %37, %cst_27 {dimension_numbers = #tpu.dot_dimension_numbers<[1], [1], [0], [0], [0, 0, 1, 0], [], []>} : vector<1x676xf32>, vector<10x676xf32>, vector<1x10xf32> -> vector<1x10xf32>
    %39 = arith.addf %34, %38 : vector<1x10xf32>
    %40 = vector.extract_strided_slice %8 {offsets = [6, 0], sizes = [1, 676], strides = [1, 1]} : vector<10x676xf32> to vector<1x676xf32>
    %c6 = arith.constant 6 : index
    %c0_28 = arith.constant 0 : index
    %c0_29 = arith.constant 0 : index
    %41 = vector.load %arg4[%c6, %c0_28, %c0_29] : memref<10x10x676xf32, #tpu.memory_space<vmem>>, vector<1x10x676xf32>
    %42 = vector.shape_cast %41 : vector<1x10x676xf32> to vector<10x676xf32>
    %cst_30 = arith.constant dense<0.000000e+00> : vector<1x10xf32>
    %43 = tpu.matmul %40, %42, %cst_30 {dimension_numbers = #tpu.dot_dimension_numbers<[1], [1], [0], [0], [0, 0, 1, 0], [], []>} : vector<1x676xf32>, vector<10x676xf32>, vector<1x10xf32> -> vector<1x10xf32>
    %44 = arith.addf %39, %43 : vector<1x10xf32>
    %45 = vector.extract_strided_slice %8 {offsets = [7, 0], sizes = [1, 676], strides = [1, 1]} : vector<10x676xf32> to vector<1x676xf32>
    %c7 = arith.constant 7 : index
    %c0_31 = arith.constant 0 : index
    %c0_32 = arith.constant 0 : index
    %46 = vector.load %arg4[%c7, %c0_31, %c0_32] : memref<10x10x676xf32, #tpu.memory_space<vmem>>, vector<1x10x676xf32>
    %47 = vector.shape_cast %46 : vector<1x10x676xf32> to vector<10x676xf32>
    %cst_33 = arith.constant dense<0.000000e+00> : vector<1x10xf32>
    %48 = tpu.matmul %45, %47, %cst_33 {dimension_numbers = #tpu.dot_dimension_numbers<[1], [1], [0], [0], [0, 0, 1, 0], [], []>} : vector<1x676xf32>, vector<10x676xf32>, vector<1x10xf32> -> vector<1x10xf32>
    %49 = arith.addf %44, %48 : vector<1x10xf32>
    %50 = vector.extract_strided_slice %8 {offsets = [8, 0], sizes = [1, 676], strides = [1, 1]} : vector<10x676xf32> to vector<1x676xf32>
    %c8 = arith.constant 8 : index
    %c0_34 = arith.constant 0 : index
    %c0_35 = arith.constant 0 : index
    %51 = vector.load %arg4[%c8, %c0_34, %c0_35] : memref<10x10x676xf32, #tpu.memory_space<vmem>>, vector<1x10x676xf32>
    %52 = vector.shape_cast %51 : vector<1x10x676xf32> to vector<10x676xf32>
    %cst_36 = arith.constant dense<0.000000e+00> : vector<1x10xf32>
    %53 = tpu.matmul %50, %52, %cst_36 {dimension_numbers = #tpu.dot_dimension_numbers<[1], [1], [0], [0], [0, 0, 1, 0], [], []>} : vector<1x676xf32>, vector<10x676xf32>, vector<1x10xf32> -> vector<1x10xf32>
    %54 = arith.addf %49, %53 : vector<1x10xf32>
    %55 = vector.extract_strided_slice %8 {offsets = [9, 0], sizes = [1, 676], strides = [1, 1]} : vector<10x676xf32> to vector<1x676xf32>
    %c9 = arith.constant 9 : index
    %c0_37 = arith.constant 0 : index
    %c0_38 = arith.constant 0 : index
    %56 = vector.load %arg4[%c9, %c0_37, %c0_38] : memref<10x10x676xf32, #tpu.memory_space<vmem>>, vector<1x10x676xf32>
    %57 = vector.shape_cast %56 : vector<1x10x676xf32> to vector<10x676xf32>
    %cst_39 = arith.constant dense<0.000000e+00> : vector<1x10xf32>
    %58 = tpu.matmul %55, %57, %cst_39 {dimension_numbers = #tpu.dot_dimension_numbers<[1], [1], [0], [0], [0, 0, 1, 0], [], []>} : vector<1x676xf32>, vector<10x676xf32>, vector<1x10xf32> -> vector<1x10xf32>
    %59 = arith.addf %54, %58 : vector<1x10xf32>
    %cst_40 = arith.constant dense<0xFF800000> : vector<1xf32>
    %60 = vector.multi_reduction <maximumf>, %59, %cst_40 [1] : vector<1x10xf32> to vector<1xf32>
    %61 = vector.shape_cast %60 : vector<1xf32> to vector<1x1xf32>
    %62 = vector.broadcast %61 : vector<1x1xf32> to vector<1x10xf32>
    %63 = arith.subf %59, %62 : vector<1x10xf32>
    %64 = math.exp %63 : vector<1x10xf32>
    %cst_41 = arith.constant dense<0.000000e+00> : vector<1xf32>
    %65 = vector.multi_reduction <add>, %64, %cst_41 [1] : vector<1x10xf32> to vector<1xf32>
    %66 = vector.shape_cast %65 : vector<1xf32> to vector<1x1xf32>
    %67 = tpu.reciprocal %66 : vector<1x1xf32> -> vector<1x1xf32>
    %68 = vector.broadcast %67 : vector<1x1xf32> to vector<1x10xf32>
    %69 = arith.mulf %64, %68 : vector<1x10xf32>
    %c0_42 = arith.constant 0 : index
    %c0_43 = arith.constant 0 : index
    %c0_44 = arith.constant 0 : index
    %70 = vector.load %arg6[%c0_42, %c0_43, %c0_44] : memref<1x1x10xf32, #tpu.memory_space<vmem>>, vector<1x1x10xf32>
    %71 = vector.shape_cast %70 : vector<1x1x10xf32> to vector<1x10xf32>
    %72 = vector.shape_cast %69 : vector<1x10xf32> to vector<1x1x10xf32>
    tpu.vector_store %arg6[%c0_42, %c0_43, %c0_44], %72 {strides = array<i32>} : memref<1x1x10xf32, #tpu.memory_space<vmem>>, vector<1x1x10xf32>,
    return
  }
  func.func @transform_0(%arg0: i32) -> (i32, i32, i32) {
    %c0_i32 = arith.constant 0 : i32
    %c0_i32_0 = arith.constant 0 : i32
    %c0_i32_1 = arith.constant 0 : i32
    return %arg0, %c0_i32, %c0_i32_0 : i32, i32, i32
  }
  func.func @transform_1(%arg0: i32) -> (i32, i32) {
    %c0_i32 = arith.constant 0 : i32
    %c0_i32_0 = arith.constant 0 : i32
    %c0_i32_1 = arith.constant 0 : i32
    return %c0_i32, %c0_i32_0 : i32, i32
  }
  func.func @transform_2(%arg0: i32) -> (i32, i32) {
    %c0_i32 = arith.constant 0 : i32
    %c0_i32_0 = arith.constant 0 : i32
    %c0_i32_1 = arith.constant 0 : i32
    return %c0_i32, %c0_i32_0 : i32, i32
  }
  func.func @transform_3(%arg0: i32) -> (i32, i32, i32) {
    %c0_i32 = arith.constant 0 : i32
    %c0_i32_0 = arith.constant 0 : i32
    %c0_i32_1 = arith.constant 0 : i32
    %c0_i32_2 = arith.constant 0 : i32
    return %c0_i32, %c0_i32_0, %c0_i32_1 : i32, i32, i32
  }
  func.func @transform_4(%arg0: i32) -> (i32, i32) {
    %c0_i32 = arith.constant 0 : i32
    %c0_i32_0 = arith.constant 0 : i32
    %c0_i32_1 = arith.constant 0 : i32
    return %c0_i32, %c0_i32_0 : i32, i32
  }
  func.func @transform_5(%arg0: i32) -> (i32, i32, i32) {
    %c0_i32 = arith.constant 0 : i32
    %c0_i32_0 = arith.constant 0 : i32
    %c0_i32_1 = arith.constant 0 : i32
    return %arg0, %c0_i32, %c0_i32_0 : i32, i32, i32
  }
}

</mosaic_0001>

<llo_original>
// kernel: abc_net_forward.1
$region0: #{abc_net_forward.1}
  #allocation0 [shape = 'u32[]', space=smem, size = 0x4, offset = 0x4, fixed_abs, tag = 'smem constant byte address 0x4 - core index']
  #allocation1 [shape = 'u32[72,128]{1,0:T(1,128)}', space=vmem, size = 0x9000, scoped, tag = 'internal scratch']
  %s0 = inlined_call_operand.vmem [shape: f32[2,9,676], index: 0, kind: input, shape index: {}]
  %s1 = inlined_call_operand.vmem [shape: f32[10,9], index: 1, kind: input, shape index: {}]
  %s2 = inlined_call_operand.vmem [shape: f32[10,1], index: 2, kind: input, shape index: {}]
  %s3 = inlined_call_operand.vmem [shape: f32[10,10,676], index: 3, kind: input, shape index: {}]
  %s4 = inlined_call_operand.vmem [shape: f32[1,10], index: 4, kind: input, shape index: {}]
  %s5 = inlined_call_operand.hbm [shape: f32[2,1,10], index: 5, kind: output, shape index: {}]
  %s6 = sld [smem:[#allocation0]]
  $region53: #{abc_net_forward.1} parent=0
    _
  %s8 = ssub.s32 1, %s6
  %s9 = scalar_select 0, %s8, %s6
  $region1: #{abc_net_forward.1} parent=0
    #allocation2 [shape = 'u8[1024]{0}', space=vmem, size = 0x400, scoped, tag = 'output window, operand 0']
    #allocation3 [shape = 's32[2]{0}', space=sflag, size = 0x8, scoped, tag = 'scoped memory for abc_net_forward.1']
    %10 = vsyncpa [#allocation3], 0
    %s11 = scalar_lea.sflag [#allocation3], 1
    %12 = vsyncpa %s11, 0
    loop: start=0, step=1, limit=4
    $region2: #{abc_net_forward.1} parent=1 // loop_pre_header
      _
    $region3: #{abc_net_forward.1} parent=1 // loop_header
      %s14 = sphi 0, %s18
      %p15 = scmp.ge.s32.totalorder %s14, 4
      %s24 = sphi 0, %s26
      %s27 = sphi 0, %s24
      %s28 = sphi 0, %s27
      %s44 = sphi 0, %s28
      %s48 = sphi 0, %s48
      %s50 = sphi 0, %s48
      %s51 = sphi 0, %s50
      %s65 = sphi 0, %s51
      %s69 = sphi 0, %s69
      %s71 = sphi 0, %s69
      %s72 = sphi 0, %s71
      %s86 = sphi 0, %s72
      %s90 = sphi 0, %s90
      %s92 = sphi 0, %s90
      %s93 = sphi 0, %s92
      %s107 = sphi 0, %s93
      %s111 = sphi 0, %s111
      %s113 = sphi 0, %s111
      %s114 = sphi 0, %s113
      %s128 = sphi 0, %s114
      %s134 = sphi 0, %s136
      %s137 = sphi 0, %s134
      %s138 = sphi 0, %s137
      %s154 = sphi 0, %s138
    $region4: #{abc_net_forward.1} parent=1 // loop_header_branch
      %17 = sbr.rel (%p15) target = $region8
    $region5: #{abc_net_forward.1} parent=1 // loop_body
      %s19 = ssub.s32 %s14, 1
      %s20 = ssub.s32 %s14, 2
      %s21 = sadd.s32 %s14, 1
      %s22 = ssub.s32 %s14, %s21
      %p23 = scmp.eq.s32.totalorder %s22, 0
      %s25 = sadd.s32 %s24, 1
      %s26 = scalar_select %p23, %s24, %s25
      %p29 = pneg %p23
      %p30 = scmp.eq.s32.totalorder %s14, 1
      %p31 = por %p29, %p30
      %p32 = scmp.ne.s32.totalorder %s24, %s27
      %p33 = scmp.eq.s32.totalorder %s14, 0
      %p34 = por %p32, %p33
      %p35 = scmp.ne.s32.totalorder %s24, %s27
      %p36 = scmp.eq.s32.totalorder %s19, 1
      %p37 = por %p35, %p36
      %p38 = scmp.ne.s32.totalorder %s27, %s28
      %p39 = scmp.eq.s32.totalorder %s19, 0
      %p40 = por %p38, %p39
      %p41 = scmp.ne.s32.totalorder %s27, %s28
      %p42 = scmp.eq.s32.totalorder %s20, 1
      %p43 = por %p41, %p42
      %p45 = scmp.ne.s32.totalorder %s28, %s44
      %p46 = scmp.eq.s32.totalorder %s20, 0
      %p47 = por %p45, %p46
      %s49 = sadd.s32 %s48, 1
      %p52 = scmp.eq.s32.totalorder %s14, 1
      %p53 = scmp.ne.s32.totalorder %s48, %s50
      %p54 = scmp.eq.s32.totalorder %s14, 0
      %p55 = por %p53, %p54
      %p56 = scmp.ne.s32.totalorder %s48, %s50
      %p57 = scmp.eq.s32.totalorder %s19, 1
      %p58 = por %p56, %p57
      %p59 = scmp.ne.s32.totalorder %s50, %s51
      %p60 = scmp.eq.s32.totalorder %s19, 0
      %p61 = por %p59, %p60
      %p62 = scmp.ne.s32.totalorder %s50, %s51
      %p63 = scmp.eq.s32.totalorder %s20, 1
      %p64 = por %p62, %p63
      %p66 = scmp.ne.s32.totalorder %s51, %s65
      %p67 = scmp.eq.s32.totalorder %s20, 0
      %p68 = por %p66, %p67
      %s70 = sadd.s32 %s69, 1
      %p73 = scmp.eq.s32.totalorder %s14, 1
      %p74 = scmp.ne.s32.totalorder %s69, %s71
      %p75 = scmp.eq.s32.totalorder %s14, 0
      %p76 = por %p74, %p75
      %p77 = scmp.ne.s32.totalorder %s69, %s71
      %p78 = scmp.eq.s32.totalorder %s19, 1
      %p79 = por %p77, %p78
      %p80 = scmp.ne.s32.totalorder %s71, %s72
      %p81 = scmp.eq.s32.totalorder %s19, 0
      %p82 = por %p80, %p81
      %p83 = scmp.ne.s32.totalorder %s71, %s72
      %p84 = scmp.eq.s32.totalorder %s20, 1
      %p85 = por %p83, %p84
      %p87 = scmp.ne.s32.totalorder %s72, %s86
      %p88 = scmp.eq.s32.totalorder %s20, 0
      %p89 = por %p87, %p88
      %s91 = sadd.s32 %s90, 1
      %p94 = scmp.eq.s32.totalorder %s14, 1
      %p95 = scmp.ne.s32.totalorder %s90, %s92
      %p96 = scmp.eq.s32.totalorder %s14, 0
      %p97 = por %p95, %p96
      %p98 = scmp.ne.s32.totalorder %s90, %s92
      %p99 = scmp.eq.s32.totalorder %s19, 1
      %p100 = por %p98, %p99
      %p101 = scmp.ne.s32.totalorder %s92, %s93
      %p102 = scmp.eq.s32.totalorder %s19, 0
      %p103 = por %p101, %p102
      %p104 = scmp.ne.s32.totalorder %s92, %s93
      %p105 = scmp.eq.s32.totalorder %s20, 1
      %p106 = por %p104, %p105
      %p108 = scmp.ne.s32.totalorder %s93, %s107
      %p109 = scmp.eq.s32.totalorder %s20, 0
      %p110 = por %p108, %p109
      %s112 = sadd.s32 %s111, 1
      %p115 = scmp.eq.s32.totalorder %s14, 1
      %p116 = scmp.ne.s32.totalorder %s111, %s113
      %p117 = scmp.eq.s32.totalorder %s14, 0
      %p118 = por %p116, %p117
      %p119 = scmp.ne.s32.totalorder %s111, %s113
      %p120 = scmp.eq.s32.totalorder %s19, 1
      %p121 = por %p119, %p120
      %p122 = scmp.ne.s32.totalorder %s113, %s114
      %p123 = scmp.eq.s32.totalorder %s19, 0
      %p124 = por %p122, %p123
      %p125 = scmp.ne.s32.totalorder %s113, %s114
      %p126 = scmp.eq.s32.totalorder %s20, 1
      %p127 = por %p125, %p126
      %p129 = scmp.ne.s32.totalorder %s114, %s128
      %p130 = scmp.eq.s32.totalorder %s20, 0
      %p131 = por %p129, %p130
      %s132 = ssub.s32 %s14, %s21
      %p133 = scmp.eq.s32.totalorder %s132, 0
      %s135 = sadd.s32 %s134, 1
      %s136 = scalar_select %p133, %s134, %s135
      %p139 = pneg %p133
      %p140 = scmp.eq.s32.totalorder %s14, 1
      %p141 = por %p139, %p140
      %p142 = scmp.ne.s32.totalorder %s134, %s137
      %p143 = scmp.eq.s32.totalorder %s14, 0
      %p144 = por %p142, %p143
      %p145 = scmp.ne.s32.totalorder %s134, %s137
      %p146 = scmp.eq.s32.totalorder %s19, 1
      %p147 = por %p145, %p146
      %p148 = scmp.ne.s32.totalorder %s137, %s138
      %p149 = scmp.eq.s32.totalorder %s19, 0
      %p150 = por %p148, %p149
      %p151 = scmp.ne.s32.totalorder %s137, %s138
      %p152 = scmp.eq.s32.totalorder %s20, 1
      %p153 = por %p151, %p152
      %p155 = scmp.ne.s32.totalorder %s138, %s154
      %p156 = scmp.eq.s32.totalorder %s20, 0
      %p157 = por %p155, %p156
      %p158 = scmp.le.s32.totalorder 1, %s14
      %p159 = scmp.lt.s32.totalorder %s14, 3
      %p160 = pnand %p158, %p159
      %p161 = pneg %p160
      // Predicated region
      $region9: #{abc_net_forward.1} parent=5 // pred_check
        _
      $region10: #{abc_net_forward.1} parent=5 // pred_check_branch
        %163 = sbr.rel (%p160) target = $region12
      $region11: #{abc_net_forward.1} parent=5 // pred_region
        %s164 = ssub.s32 %s14, 1
        // Predicated region
        $region13: #{abc_net_forward.1} parent=11 // pred_check
          %p165 = pneg %p61
        $region14: #{abc_net_forward.1} parent=11 // pred_check_branch
          %167 = sbr.rel (%p165) target = $region16
        $region15: #{abc_net_forward.1} parent=11 // pred_region
          _
        $region16: #{abc_net_forward.1} parent=11 // pred_fallthru
          _
        // Predicated region
        $region17: #{abc_net_forward.1} parent=11 // pred_check
          %p168 = pneg %p82
        $region18: #{abc_net_forward.1} parent=11 // pred_check_branch
          %170 = sbr.rel (%p168) target = $region20
        $region19: #{abc_net_forward.1} parent=11 // pred_region
          _
        $region20: #{abc_net_forward.1} parent=11 // pred_fallthru
          _
        // Predicated region
        $region21: #{abc_net_forward.1} parent=11 // pred_check
          %p171 = pneg %p103
        $region22: #{abc_net_forward.1} parent=11 // pred_check_branch
          %173 = sbr.rel (%p171) target = $region24
        $region23: #{abc_net_forward.1} parent=11 // pred_region
          _
        $region24: #{abc_net_forward.1} parent=11 // pred_fallthru
          _
        // Predicated region
        $region25: #{abc_net_forward.1} parent=11 // pred_check
          %p174 = pneg %p124
        $region26: #{abc_net_forward.1} parent=11 // pred_check_branch
          %176 = sbr.rel (%p174) target = $region28
        $region27: #{abc_net_forward.1} parent=11 // pred_region
          _
        $region28: #{abc_net_forward.1} parent=11 // pred_fallthru
          _
      $region12: #{abc_net_forward.1} parent=5 // pred_fallthru
        _
      %p177 = scmp.lt.s32.totalorder %s14, 2
      // Predicated region
      $region29: #{abc_net_forward.1} parent=5 // pred_check
        %p178 = pneg %p177
      $region30: #{abc_net_forward.1} parent=5 // pred_check_branch
        %180 = sbr.rel (%p178) target = $region32
      $region31: #{abc_net_forward.1} parent=5 // pred_region
        // Predicated region
        $region33: #{abc_net_forward.1} parent=31 // pred_check
          %p181 = pneg %p34
        $region34: #{abc_net_forward.1} parent=31 // pred_check_branch
          %183 = sbr.rel (%p181) target = $region36
        $region35: #{abc_net_forward.1} parent=31 // pred_region
          %p184 = scmp.lt.s32.totalorder %s14, 1
          %s185 = scalar_select %p184, %s14, 1
          %s186 = smul.addr %s185, 12
          %s187 = smul.addr %s186, 8
          %s188 = scalar_lea.vmem %s0, %s187
        $region36: #{abc_net_forward.1} parent=31 // pred_fallthru
          _
      $region32: #{abc_net_forward.1} parent=5 // pred_fallthru
        _
      %p189 = scmp.le.s32.totalorder 1, %s14
      %p190 = scmp.lt.s32.totalorder %s14, 3
      %p191 = pnand %p189, %p190
      %p192 = pneg %p191
      // Predicated region
      $region37: #{abc_net_forward.1} parent=5 // pred_check
        _
      $region38: #{abc_net_forward.1} parent=5 // pred_check_branch
        %194 = sbr.rel (%p191) target = $region40
      $region39: #{abc_net_forward.1} parent=5 // pred_region
        %s195 = ssub.s32 %s14, 1
        %p196 = scmp.lt.s32.totalorder %s19, 1
        %s197 = scalar_select %p196, %s19, 1
        %s198 = smul.addr %s197, 12
        %s199 = smul.addr %s198, 8
        %s200 = scalar_lea.vmem %s0, %s199
        %p201 = pneg %p40
        %p202 = pneg %p37
        %p203 = pneg %p61
        %p204 = pneg %p58
        %p205 = pneg %p82
        %p206 = pneg %p79
        %p207 = pneg %p103
        %p208 = pneg %p100
        %p209 = pneg %p124
        %p210 = pneg %p121
        %p211 = pneg %p150
        %p212 = pneg %p147
        %s213 = sand.u32 %s137, 1
        %s214 = scalar_lea.sflag [#allocation3], %s213
        %s215 = sand.u32 %s137, 1
        %s216 = scalar_lea.vmem [#allocation2], %s215
        %p217 = scmp.lt.s32.totalorder %s19, 1
        %s218 = scalar_select %p217, %s19, 1
        %s219 = smul.addr %s218, 12
        %s220 = smul.addr %s219, 8
        %s221 = scalar_lea.vmem %s0, %s220
        %v222 = vld [vmem:[%s221] sm:$0xff]
        %v223 = vld [vmem:[%s221 + $0x8] sm:$0xff]
        %v224 = vld [vmem:[%s221 + $0x10] sm:$0xff]
        %v225 = vld [vmem:[%s221 + $0x18] sm:$0xff]
        %v226 = vld [vmem:[%s221 + $0x20] sm:$0xff]
        %v227 = vld [vmem:[%s221 + $0x28] sm:$0xff]
        %v228 = vld [vmem:[%s221 + $0x30] sm:$0x1]
        %v229 = vld [vmem:[%s221 + $0x38] sm:$0x1]
        %v230 = vld [vmem:[%s221 + $0x40] sm:$0x1]
        %v231 = vld [vmem:[%s221 + $0x48] sm:$0x1]
        %v232 = vld [vmem:[%s221 + $0x50] sm:$0x1]
        %v233 = vld [vmem:[%s221 + $0x58] sm:$0x1]
        %v234 = vld [vmem:[%s1] sm:$0xff]
        %v235 = vld [vmem:[%s1 + $0x8] sm:$0x3]
        %v236 = vld [vmem:[%s2] sm:$0xff]
        %v237 = vld [vmem:[%s2 + $0x8] sm:$0x3]
        %239 = vset.pattern.permute.xlu0 0
        %240 = vperm.xlu0 %239, %v236
        %v241 = vpop.permute.xlu0 %240
        %244 = vset.pattern.permute.xlu0 0
        %245 = vperm.xlu0 %244, %v237
        %v246 = vpop.permute.xlu0 %245
        %vm248 = vcmask 72704
        %v250 = vsel %vm248, %v234, 0
        %v253 = vsel %vm248, %v235, 0
        %vm255 = vcmask 1040384
        %v257 = vsel %vm255, %v228, 0
        %v260 = vsel %vm255, %v229, 0
        %v263 = vsel %vm255, %v230, 0
        %v266 = vsel %vm255, %v231, 0
        %v269 = vsel %vm255, %v232, 0
        %v272 = vsel %vm255, %v233, 0
        %274 = vmatpush.msra.mxu0 0.0
        %275 = vmatpush.msra.mxu0 0.0
        %276 = vmatpush.msra.mxu0 0.0
        %277 = vmatpush.msra.mxu0 0.0
        %278 = vmatpush.msra.mxu0 0.0
        %279 = vmatpush.msra.mxu0 0.0
        %280 = vmatpush.msra.mxu0 0.0
        %281 = vmatpush.msra.mxu0 0.0
        %282 = vmatpush.msra.mxu0 0.0
        %283 = vmatpush.msra.mxu0 0.0
        %284 = vmatpush.msra.mxu0 0.0
        %285 = vmatpush.msra.mxu0 0.0
        %286 = vmatpush.msra.mxu0 0.0
        %287 = vmatpush.msra.mxu0 0.0
        %288 = vmatpush.msra.mxu0 %v257
        %289 = vmatpush.msra.mxu0 %v222
        %290 = vmatmul.f32.gmra.mxu0 %v250
        %v291 = vpop.f32.mrf.mxu0
        %v292 = vadd.f32 %v241, %v291
        %293 = vmatmul.f32.gmra.mxu0 %v253
        %v294 = vpop.f32.mrf.mxu0
        %v295 = vadd.f32 %v246, %v294
        %296 = vdwg.mxu0
        %297 = vmatpush.msra.mxu0 0.0
        %298 = vmatpush.msra.mxu0 0.0
        %299 = vmatpush.msra.mxu0 0.0
        %300 = vmatpush.msra.mxu0 0.0
        %301 = vmatpush.msra.mxu0 0.0
        %302 = vmatpush.msra.mxu0 0.0
        %303 = vmatpush.msra.mxu0 0.0
        %304 = vmatpush.msra.mxu0 0.0
        %305 = vmatpush.msra.mxu0 0.0
        %306 = vmatpush.msra.mxu0 0.0
        %307 = vmatpush.msra.mxu0 0.0
        %308 = vmatpush.msra.mxu0 0.0
        %309 = vmatpush.msra.mxu0 0.0
        %310 = vmatpush.msra.mxu0 0.0
        %311 = vmatpush.msra.mxu0 %v260
        %312 = vmatpush.msra.mxu0 %v223
        %313 = vmatmul.f32.gmra.mxu0 %v250
        %v314 = vpop.f32.mrf.mxu0
        %v315 = vadd.f32 %v241, %v314
        %316 = vmatmul.f32.gmra.mxu0 %v253
        %v317 = vpop.f32.mrf.mxu0
        %v318 = vadd.f32 %v246, %v317
        %319 = vdwg.mxu0
        %320 = vmatpush.msra.mxu0 0.0
        %321 = vmatpush.msra.mxu0 0.0
        %322 = vmatpush.msra.mxu0 0.0
        %323 = vmatpush.msra.mxu0 0.0
        %324 = vmatpush.msra.mxu0 0.0
        %325 = vmatpush.msra.mxu0 0.0
        %326 = vmatpush.msra.mxu0 0.0
        %327 = vmatpush.msra.mxu0 0.0
        %328 = vmatpush.msra.mxu0 0.0
        %329 = vmatpush.msra.mxu0 0.0
        %330 = vmatpush.msra.mxu0 0.0
        %331 = vmatpush.msra.mxu0 0.0
        %332 = vmatpush.msra.mxu0 0.0
        %333 = vmatpush.msra.mxu0 0.0
        %334 = vmatpush.msra.mxu0 %v263
        %335 = vmatpush.msra.mxu0 %v224
        %336 = vmatmul.f32.gmra.mxu0 %v250
        %v337 = vpop.f32.mrf.mxu0
        %v338 = vadd.f32 %v241, %v337
        %339 = vmatmul.f32.gmra.mxu0 %v253
        %v340 = vpop.f32.mrf.mxu0
        %v341 = vadd.f32 %v246, %v340
        %342 = vdwg.mxu0
        %343 = vmatpush.msra.mxu0 0.0
        %344 = vmatpush.msra.mxu0 0.0
        %345 = vmatpush.msra.mxu0 0.0
        %346 = vmatpush.msra.mxu0 0.0
        %347 = vmatpush.msra.mxu0 0.0
        %348 = vmatpush.msra.mxu0 0.0
        %349 = vmatpush.msra.mxu0 0.0
        %350 = vmatpush.msra.mxu0 0.0
        %351 = vmatpush.msra.mxu0 0.0
        %352 = vmatpush.msra.mxu0 0.0
        %353 = vmatpush.msra.mxu0 0.0
        %354 = vmatpush.msra.mxu0 0.0
        %355 = vmatpush.msra.mxu0 0.0
        %356 = vmatpush.msra.mxu0 0.0
        %357 = vmatpush.msra.mxu0 %v266
        %358 = vmatpush.msra.mxu0 %v225
        %359 = vmatmul.f32.gmra.mxu0 %v250
        %v360 = vpop.f32.mrf.mxu0
        %v361 = vadd.f32 %v241, %v360
        %362 = vmatmul.f32.gmra.mxu0 %v253
        %v363 = vpop.f32.mrf.mxu0
        %v364 = vadd.f32 %v246, %v363
        %365 = vdwg.mxu0
        %366 = vmatpush.msra.mxu0 0.0
        %367 = vmatpush.msra.mxu0 0.0
        %368 = vmatpush.msra.mxu0 0.0
        %369 = vmatpush.msra.mxu0 0.0
        %370 = vmatpush.msra.mxu0 0.0
        %371 = vmatpush.msra.mxu0 0.0
        %372 = vmatpush.msra.mxu0 0.0
        %373 = vmatpush.msra.mxu0 0.0
        %374 = vmatpush.msra.mxu0 0.0
        %375 = vmatpush.msra.mxu0 0.0
        %376 = vmatpush.msra.mxu0 0.0
        %377 = vmatpush.msra.mxu0 0.0
        %378 = vmatpush.msra.mxu0 0.0
        %379 = vmatpush.msra.mxu0 0.0
        %380 = vmatpush.msra.mxu0 %v269
        %381 = vmatpush.msra.mxu0 %v226
        %382 = vmatmul.f32.gmra.mxu0 %v250
        %v383 = vpop.f32.mrf.mxu0
        %v384 = vadd.f32 %v241, %v383
        %385 = vmatmul.f32.gmra.mxu0 %v253
        %v386 = vpop.f32.mrf.mxu0
        %v387 = vadd.f32 %v246, %v386
        %388 = vdwg.mxu0
        %389 = vmatpush.msra.mxu0 0.0
        %390 = vmatpush.msra.mxu0 0.0
        %391 = vmatpush.msra.mxu0 0.0
        %392 = vmatpush.msra.mxu0 0.0
        %393 = vmatpush.msra.mxu0 0.0
        %394 = vmatpush.msra.mxu0 0.0
        %395 = vmatpush.msra.mxu0 0.0
        %396 = vmatpush.msra.mxu0 0.0
        %397 = vmatpush.msra.mxu0 0.0
        %398 = vmatpush.msra.mxu0 0.0
        %399 = vmatpush.msra.mxu0 0.0
        %400 = vmatpush.msra.mxu0 0.0
        %401 = vmatpush.msra.mxu0 0.0
        %402 = vmatpush.msra.mxu0 0.0
        %403 = vmatpush.msra.mxu0 %v272
        %404 = vmatpush.msra.mxu0 %v227
        %405 = vmatmul.f32.gmra.mxu0 %v250
        %v406 = vpop.f32.mrf.mxu0
        %v407 = vadd.f32 %v241, %v406
        %408 = vmatmul.f32.gmra.mxu0 %v253
        %v409 = vpop.f32.mrf.mxu0
        %v410 = vadd.f32 %v246, %v409
        %411 = vdwg.mxu0
        %v412 = vmax.f32 %v292, 0.0
        %v413 = vmax.f32 %v315, 0.0
        %v414 = vmax.f32 %v338, 0.0
        %v415 = vmax.f32 %v361, 0.0
        %v416 = vmax.f32 %v384, 0.0
        %v417 = vmax.f32 %v407, 0.0
        %v418 = vmax.f32 %v295, 0.0
        %v419 = vmax.f32 %v318, 0.0
        %v420 = vmax.f32 %v341, 0.0
        %v421 = vmax.f32 %v364, 0.0
        %v422 = vmax.f32 %v387, 0.0
        %v423 = vmax.f32 %v410, 0.0
        %v424 = vld [vmem:[%s4] sm:$0x1]
        %v425 = vld [vmem:[%s3] sm:$0xff]
        %v426 = vld [vmem:[%s3 + $0x8] sm:$0xff]
        %v427 = vld [vmem:[%s3 + $0x10] sm:$0xff]
        %v428 = vld [vmem:[%s3 + $0x18] sm:$0xff]
        %v429 = vld [vmem:[%s3 + $0x20] sm:$0xff]
        %v430 = vld [vmem:[%s3 + $0x28] sm:$0xff]
        %v431 = vld [vmem:[%s3 + $0x30] sm:$0x3]
        %v432 = vld [vmem:[%s3 + $0x38] sm:$0x3]
        %v433 = vld [vmem:[%s3 + $0x40] sm:$0x3]
        %v434 = vld [vmem:[%s3 + $0x48] sm:$0x3]
        %v435 = vld [vmem:[%s3 + $0x50] sm:$0x3]
        %v436 = vld [vmem:[%s3 + $0x58] sm:$0x3]
        %vm437 = vcmask 293888
        %v439 = vsel %vm437, %v417, 0
        %v442 = vsel %vm437, %v430, 0
        %v445 = vsel %vm437, %v436, 0
        %447 = vmatpush.xpose.msra.mxu0 0.0
        %448 = vmatpush.xpose.msra.mxu0 0.0
        %449 = vmatpush.xpose.msra.mxu0 0.0
        %450 = vmatpush.xpose.msra.mxu0 0.0
        %451 = vmatpush.xpose.msra.mxu0 0.0
        %452 = vmatpush.xpose.msra.mxu0 0.0
        %453 = vmatpush.xpose.msra.mxu0 0.0
        %454 = vmatpush.xpose.msra.mxu0 0.0
        %455 = vmatpush.xpose.msra.mxu0 0.0
        %456 = vmatpush.xpose.msra.mxu0 0.0
        %457 = vmatpush.xpose.msra.mxu0 0.0
        %458 = vmatpush.xpose.msra.mxu0 0.0
        %459 = vmatpush.xpose.msra.mxu0 0.0
        %460 = vmatpush.xpose.msra.mxu0 0.0
        %461 = vmatpush.xpose.msra.mxu0 %v431
        %462 = vmatpush.xpose.msra.mxu0 %v425
        %463 = vmatmul.f32.gmra.mxu0 %v412
        %v464 = vpop.f32.mrf.mxu0
        %v465 = vadd.f32 0.0, %v464
        %466 = vdwg.mxu0
        %467 = vmatpush.xpose.msra.mxu0 0.0
        %468 = vmatpush.xpose.msra.mxu0 0.0
        %469 = vmatpush.xpose.msra.mxu0 0.0
        %470 = vmatpush.xpose.msra.mxu0 0.0
        %471 = vmatpush.xpose.msra.mxu0 0.0
        %472 = vmatpush.xpose.msra.mxu0 0.0
        %473 = vmatpush.xpose.msra.mxu0 0.0
        %474 = vmatpush.xpose.msra.mxu0 0.0
        %475 = vmatpush.xpose.msra.mxu0 0.0
        %476 = vmatpush.xpose.msra.mxu0 0.0
        %477 = vmatpush.xpose.msra.mxu0 0.0
        %478 = vmatpush.xpose.msra.mxu0 0.0
        %479 = vmatpush.xpose.msra.mxu0 0.0
        %480 = vmatpush.xpose.msra.mxu0 0.0
        %481 = vmatpush.xpose.msra.mxu0 %v432
        %482 = vmatpush.xpose.msra.mxu0 %v426
        %483 = vmatmul.f32.gmra.mxu0 %v413
        %v484 = vpop.f32.mrf.mxu0
        %v485 = vadd.f32 %v465, %v484
        %486 = vdwg.mxu0
        %487 = vmatpush.xpose.msra.mxu0 0.0
        %488 = vmatpush.xpose.msra.mxu0 0.0
        %489 = vmatpush.xpose.msra.mxu0 0.0
        %490 = vmatpush.xpose.msra.mxu0 0.0
        %491 = vmatpush.xpose.msra.mxu0 0.0
        %492 = vmatpush.xpose.msra.mxu0 0.0
        %493 = vmatpush.xpose.msra.mxu0 0.0
        %494 = vmatpush.xpose.msra.mxu0 0.0
        %495 = vmatpush.xpose.msra.mxu0 0.0
        %496 = vmatpush.xpose.msra.mxu0 0.0
        %497 = vmatpush.xpose.msra.mxu0 0.0
        %498 = vmatpush.xpose.msra.mxu0 0.0
        %499 = vmatpush.xpose.msra.mxu0 0.0
        %500 = vmatpush.xpose.msra.mxu0 0.0
        %501 = vmatpush.xpose.msra.mxu0 %v433
        %502 = vmatpush.xpose.msra.mxu0 %v427
        %503 = vmatmul.f32.gmra.mxu0 %v414
        %v504 = vpop.f32.mrf.mxu0
        %v505 = vadd.f32 %v485, %v504
        %506 = vdwg.mxu0
        %507 = vmatpush.xpose.msra.mxu0 0.0
        %508 = vmatpush.xpose.msra.mxu0 0.0
        %509 = vmatpush.xpose.msra.mxu0 0.0
        %510 = vmatpush.xpose.msra.mxu0 0.0
        %511 = vmatpush.xpose.msra.mxu0 0.0
        %512 = vmatpush.xpose.msra.mxu0 0.0
        %513 = vmatpush.xpose.msra.mxu0 0.0
        %514 = vmatpush.xpose.msra.mxu0 0.0
        %515 = vmatpush.xpose.msra.mxu0 0.0
        %516 = vmatpush.xpose.msra.mxu0 0.0
        %517 = vmatpush.xpose.msra.mxu0 0.0
        %518 = vmatpush.xpose.msra.mxu0 0.0
        %519 = vmatpush.xpose.msra.mxu0 0.0
        %520 = vmatpush.xpose.msra.mxu0 0.0
        %521 = vmatpush.xpose.msra.mxu0 %v434
        %522 = vmatpush.xpose.msra.mxu0 %v428
        %523 = vmatmul.f32.gmra.mxu0 %v415
        %v524 = vpop.f32.mrf.mxu0
        %v525 = vadd.f32 %v505, %v524
        %526 = vdwg.mxu0
        %527 = vmatpush.xpose.msra.mxu0 0.0
        %528 = vmatpush.xpose.msra.mxu0 0.0
        %529 = vmatpush.xpose.msra.mxu0 0.0
        %530 = vmatpush.xpose.msra.mxu0 0.0
        %531 = vmatpush.xpose.msra.mxu0 0.0
        %532 = vmatpush.xpose.msra.mxu0 0.0
        %533 = vmatpush.xpose.msra.mxu0 0.0
        %534 = vmatpush.xpose.msra.mxu0 0.0
        %535 = vmatpush.xpose.msra.mxu0 0.0
        %536 = vmatpush.xpose.msra.mxu0 0.0
        %537 = vmatpush.xpose.msra.mxu0 0.0
        %538 = vmatpush.xpose.msra.mxu0 0.0
        %539 = vmatpush.xpose.msra.mxu0 0.0
        %540 = vmatpush.xpose.msra.mxu0 0.0
        %541 = vmatpush.xpose.msra.mxu0 %v435
        %542 = vmatpush.xpose.msra.mxu0 %v429
        %543 = vmatmul.f32.gmra.mxu0 %v416
        %v544 = vpop.f32.mrf.mxu0
        %v545 = vadd.f32 %v525, %v544
        %546 = vdwg.mxu0
        %547 = vmatpush.xpose.msra.mxu0 0.0
        %548 = vmatpush.xpose.msra.mxu0 0.0
        %549 = vmatpush.xpose.msra.mxu0 0.0
        %550 = vmatpush.xpose.msra.mxu0 0.0
        %551 = vmatpush.xpose.msra.mxu0 0.0
        %552 = vmatpush.xpose.msra.mxu0 0.0
        %553 = vmatpush.xpose.msra.mxu0 0.0
        %554 = vmatpush.xpose.msra.mxu0 0.0
        %555 = vmatpush.xpose.msra.mxu0 0.0
        %556 = vmatpush.xpose.msra.mxu0 0.0
        %557 = vmatpush.xpose.msra.mxu0 0.0
        %558 = vmatpush.xpose.msra.mxu0 0.0
        %559 = vmatpush.xpose.msra.mxu0 0.0
        %560 = vmatpush.xpose.msra.mxu0 0.0
        %561 = vmatpush.xpose.msra.mxu0 %v445
        %562 = vmatpush.xpose.msra.mxu0 %v442
        %563 = vmatmul.f32.gmra.mxu0 %v439
        %v564 = vpop.f32.mrf.mxu0
        %v565 = vadd.f32 %v545, %v564
        %566 = vdwg.mxu0
        %v567 = vadd.f32 %v424, %v565
        %s568 = scalar_lea.vmem %s3, 96
        %v569 = vld [vmem:[%s568] sm:$0xff]
        %v570 = vld [vmem:[%s568 + $0x8] sm:$0xff]
        %v571 = vld [vmem:[%s568 + $0x10] sm:$0xff]
        %v572 = vld [vmem:[%s568 + $0x18] sm:$0xff]
        %v573 = vld [vmem:[%s568 + $0x20] sm:$0xff]
        %v574 = vld [vmem:[%s568 + $0x28] sm:$0xff]
        %v575 = vld [vmem:[%s568 + $0x30] sm:$0x3]
        %v576 = vld [vmem:[%s568 + $0x38] sm:$0x3]
        %v577 = vld [vmem:[%s568 + $0x40] sm:$0x3]
        %v578 = vld [vmem:[%s568 + $0x48] sm:$0x3]
        %v579 = vld [vmem:[%s568 + $0x50] sm:$0x3]
        %v580 = vld [vmem:[%s568 + $0x58] sm:$0x3]
        %v586 = vrot.slane %v412, 1
        %v587 = vrot.slane %v413, 1
        %v588 = vrot.slane %v414, 1
        %v589 = vrot.slane %v415, 1
        %v590 = vrot.slane %v416, 1
        %v591 = vrot.slane %v417, 1
        %v597 = vsel %vm437, %v591, 0
        %v600 = vsel %vm437, %v574, 0
        %v603 = vsel %vm437, %v580, 0
        %605 = vmatpush.xpose.msra.mxu0 0.0
        %606 = vmatpush.xpose.msra.mxu0 0.0
        %607 = vmatpush.xpose.msra.mxu0 0.0
        %608 = vmatpush.xpose.msra.mxu0 0.0
        %609 = vmatpush.xpose.msra.mxu0 0.0
        %610 = vmatpush.xpose.msra.mxu0 0.0
        %611 = vmatpush.xpose.msra.mxu0 0.0
        %612 = vmatpush.xpose.msra.mxu0 0.0
        %613 = vmatpush.xpose.msra.mxu0 0.0
        %614 = vmatpush.xpose.msra.mxu0 0.0
        %615 = vmatpush.xpose.msra.mxu0 0.0
        %616 = vmatpush.xpose.msra.mxu0 0.0
        %617 = vmatpush.xpose.msra.mxu0 0.0
        %618 = vmatpush.xpose.msra.mxu0 0.0
        %619 = vmatpush.xpose.msra.mxu0 %v575
        %620 = vmatpush.xpose.msra.mxu0 %v569
        %621 = vmatmul.f32.gmra.mxu0 %v586
        %v622 = vpop.f32.mrf.mxu0
        %v623 = vadd.f32 0.0, %v622
        %624 = vdwg.mxu0
        %625 = vmatpush.xpose.msra.mxu0 0.0
        %626 = vmatpush.xpose.msra.mxu0 0.0
        %627 = vmatpush.xpose.msra.mxu0 0.0
        %628 = vmatpush.xpose.msra.mxu0 0.0
        %629 = vmatpush.xpose.msra.mxu0 0.0
        %630 = vmatpush.xpose.msra.mxu0 0.0
        %631 = vmatpush.xpose.msra.mxu0 0.0
        %632 = vmatpush.xpose.msra.mxu0 0.0
        %633 = vmatpush.xpose.msra.mxu0 0.0
        %634 = vmatpush.xpose.msra.mxu0 0.0
        %635 = vmatpush.xpose.msra.mxu0 0.0
        %636 = vmatpush.xpose.msra.mxu0 0.0
        %637 = vmatpush.xpose.msra.mxu0 0.0
        %638 = vmatpush.xpose.msra.mxu0 0.0
        %639 = vmatpush.xpose.msra.mxu0 %v576
        %640 = vmatpush.xpose.msra.mxu0 %v570
        %641 = vmatmul.f32.gmra.mxu0 %v587
        %v642 = vpop.f32.mrf.mxu0
        %v643 = vadd.f32 %v623, %v642
        %644 = vdwg.mxu0
        %645 = vmatpush.xpose.msra.mxu0 0.0
        %646 = vmatpush.xpose.msra.mxu0 0.0
        %647 = vmatpush.xpose.msra.mxu0 0.0
        %648 = vmatpush.xpose.msra.mxu0 0.0
        %649 = vmatpush.xpose.msra.mxu0 0.0
        %650 = vmatpush.xpose.msra.mxu0 0.0
        %651 = vmatpush.xpose.msra.mxu0 0.0
        %652 = vmatpush.xpose.msra.mxu0 0.0
        %653 = vmatpush.xpose.msra.mxu0 0.0
        %654 = vmatpush.xpose.msra.mxu0 0.0
        %655 = vmatpush.xpose.msra.mxu0 0.0
        %656 = vmatpush.xpose.msra.mxu0 0.0
        %657 = vmatpush.xpose.msra.mxu0 0.0
        %658 = vmatpush.xpose.msra.mxu0 0.0
        %659 = vmatpush.xpose.msra.mxu0 %v577
        %660 = vmatpush.xpose.msra.mxu0 %v571
        %661 = vmatmul.f32.gmra.mxu0 %v588
        %v662 = vpop.f32.mrf.mxu0
        %v663 = vadd.f32 %v643, %v662
        %664 = vdwg.mxu0
        %665 = vmatpush.xpose.msra.mxu0 0.0
        %666 = vmatpush.xpose.msra.mxu0 0.0
        %667 = vmatpush.xpose.msra.mxu0 0.0
        %668 = vmatpush.xpose.msra.mxu0 0.0
        %669 = vmatpush.xpose.msra.mxu0 0.0
        %670 = vmatpush.xpose.msra.mxu0 0.0
        %671 = vmatpush.xpose.msra.mxu0 0.0
        %672 = vmatpush.xpose.msra.mxu0 0.0
        %673 = vmatpush.xpose.msra.mxu0 0.0
        %674 = vmatpush.xpose.msra.mxu0 0.0
        %675 = vmatpush.xpose.msra.mxu0 0.0
        %676 = vmatpush.xpose.msra.mxu0 0.0
        %677 = vmatpush.xpose.msra.mxu0 0.0
        %678 = vmatpush.xpose.msra.mxu0 0.0
        %679 = vmatpush.xpose.msra.mxu0 %v578
        %680 = vmatpush.xpose.msra.mxu0 %v572
        %681 = vmatmul.f32.gmra.mxu0 %v589
        %v682 = vpop.f32.mrf.mxu0
        %v683 = vadd.f32 %v663, %v682
        %684 = vdwg.mxu0
        %685 = vmatpush.xpose.msra.mxu0 0.0
        %686 = vmatpush.xpose.msra.mxu0 0.0
        %687 = vmatpush.xpose.msra.mxu0 0.0
        %688 = vmatpush.xpose.msra.mxu0 0.0
        %689 = vmatpush.xpose.msra.mxu0 0.0
        %690 = vmatpush.xpose.msra.mxu0 0.0
        %691 = vmatpush.xpose.msra.mxu0 0.0
        %692 = vmatpush.xpose.msra.mxu0 0.0
        %693 = vmatpush.xpose.msra.mxu0 0.0
        %694 = vmatpush.xpose.msra.mxu0 0.0
        %695 = vmatpush.xpose.msra.mxu0 0.0
        %696 = vmatpush.xpose.msra.mxu0 0.0
        %697 = vmatpush.xpose.msra.mxu0 0.0
        %698 = vmatpush.xpose.msra.mxu0 0.0
        %699 = vmatpush.xpose.msra.mxu0 %v579
        %700 = vmatpush.xpose.msra.mxu0 %v573
        %701 = vmatmul.f32.gmra.mxu0 %v590
        %v702 = vpop.f32.mrf.mxu0
        %v703 = vadd.f32 %v683, %v702
        %704 = vdwg.mxu0
        %705 = vmatpush.xpose.msra.mxu0 0.0
        %706 = vmatpush.xpose.msra.mxu0 0.0
        %707 = vmatpush.xpose.msra.mxu0 0.0
        %708 = vmatpush.xpose.msra.mxu0 0.0
        %709 = vmatpush.xpose.msra.mxu0 0.0
        %710 = vmatpush.xpose.msra.mxu0 0.0
        %711 = vmatpush.xpose.msra.mxu0 0.0
        %712 = vmatpush.xpose.msra.mxu0 0.0
        %713 = vmatpush.xpose.msra.mxu0 0.0
        %714 = vmatpush.xpose.msra.mxu0 0.0
        %715 = vmatpush.xpose.msra.mxu0 0.0
        %716 = vmatpush.xpose.msra.mxu0 0.0
        %717 = vmatpush.xpose.msra.mxu0 0.0
        %718 = vmatpush.xpose.msra.mxu0 0.0
        %719 = vmatpush.xpose.msra.mxu0 %v603
        %720 = vmatpush.xpose.msra.mxu0 %v600
        %721 = vmatmul.f32.gmra.mxu0 %v597
        %v722 = vpop.f32.mrf.mxu0
        %v723 = vadd.f32 %v703, %v722
        %724 = vdwg.mxu0
        %v725 = vadd.f32 %v567, %v723
        %s726 = scalar_lea.vmem %s3, 192
        %v727 = vld [vmem:[%s726] sm:$0xff]
        %v728 = vld [vmem:[%s726 + $0x8] sm:$0xff]
        %v729 = vld [vmem:[%s726 + $0x10] sm:$0xff]
        %v730 = vld [vmem:[%s726 + $0x18] sm:$0xff]
        %v731 = vld [vmem:[%s726 + $0x20] sm:$0xff]
        %v732 = vld [vmem:[%s726 + $0x28] sm:$0xff]
        %v733 = vld [vmem:[%s726 + $0x30] sm:$0x3]
        %v734 = vld [vmem:[%s726 + $0x38] sm:$0x3]
        %v735 = vld [vmem:[%s726 + $0x40] sm:$0x3]
        %v736 = vld [vmem:[%s726 + $0x48] sm:$0x3]
        %v737 = vld [vmem:[%s726 + $0x50] sm:$0x3]
        %v738 = vld [vmem:[%s726 + $0x58] sm:$0x3]
        %v739 = vrot.slane %v412, 2
        %v740 = vrot.slane %v413, 2
        %v741 = vrot.slane %v414, 2
        %v742 = vrot.slane %v415, 2
        %v743 = vrot.slane %v416, 2
        %v744 = vrot.slane %v417, 2
        %v750 = vsel %vm437, %v744, 0
        %v753 = vsel %vm437, %v732, 0
        %v756 = vsel %vm437, %v738, 0
        %758 = vmatpush.xpose.msra.mxu0 0.0
        %759 = vmatpush.xpose.msra.mxu0 0.0
        %760 = vmatpush.xpose.msra.mxu0 0.0
        %761 = vmatpush.xpose.msra.mxu0 0.0
        %762 = vmatpush.xpose.msra.mxu0 0.0
        %763 = vmatpush.xpose.msra.mxu0 0.0
        %764 = vmatpush.xpose.msra.mxu0 0.0
        %765 = vmatpush.xpose.msra.mxu0 0.0
        %766 = vmatpush.xpose.msra.mxu0 0.0
        %767 = vmatpush.xpose.msra.mxu0 0.0
        %768 = vmatpush.xpose.msra.mxu0 0.0
        %769 = vmatpush.xpose.msra.mxu0 0.0
        %770 = vmatpush.xpose.msra.mxu0 0.0
        %771 = vmatpush.xpose.msra.mxu0 0.0
        %772 = vmatpush.xpose.msra.mxu0 %v733
        %773 = vmatpush.xpose.msra.mxu0 %v727
        %774 = vmatmul.f32.gmra.mxu0 %v739
        %v775 = vpop.f32.mrf.mxu0
        %v776 = vadd.f32 0.0, %v775
        %777 = vdwg.mxu0
        %778 = vmatpush.xpose.msra.mxu0 0.0
        %779 = vmatpush.xpose.msra.mxu0 0.0
        %780 = vmatpush.xpose.msra.mxu0 0.0
        %781 = vmatpush.xpose.msra.mxu0 0.0
        %782 = vmatpush.xpose.msra.mxu0 0.0
        %783 = vmatpush.xpose.msra.mxu0 0.0
        %784 = vmatpush.xpose.msra.mxu0 0.0
        %785 = vmatpush.xpose.msra.mxu0 0.0
        %786 = vmatpush.xpose.msra.mxu0 0.0
        %787 = vmatpush.xpose.msra.mxu0 0.0
        %788 = vmatpush.xpose.msra.mxu0 0.0
        %789 = vmatpush.xpose.msra.mxu0 0.0
        %790 = vmatpush.xpose.msra.mxu0 0.0
        %791 = vmatpush.xpose.msra.mxu0 0.0
        %792 = vmatpush.xpose.msra.mxu0 %v734
        %793 = vmatpush.xpose.msra.mxu0 %v728
        %794 = vmatmul.f32.gmra.mxu0 %v740
        %v795 = vpop.f32.mrf.mxu0
        %v796 = vadd.f32 %v776, %v795
        %797 = vdwg.mxu0
        %798 = vmatpush.xpose.msra.mxu0 0.0
        %799 = vmatpush.xpose.msra.mxu0 0.0
        %800 = vmatpush.xpose.msra.mxu0 0.0
        %801 = vmatpush.xpose.msra.mxu0 0.0
        %802 = vmatpush.xpose.msra.mxu0 0.0
        %803 = vmatpush.xpose.msra.mxu0 0.0
        %804 = vmatpush.xpose.msra.mxu0 0.0
        %805 = vmatpush.xpose.msra.mxu0 0.0
        %806 = vmatpush.xpose.msra.mxu0 0.0
        %807 = vmatpush.xpose.msra.mxu0 0.0
        %808 = vmatpush.xpose.msra.mxu0 0.0
        %809 = vmatpush.xpose.msra.mxu0 0.0
        %810 = vmatpush.xpose.msra.mxu0 0.0
        %811 = vmatpush.xpose.msra.mxu0 0.0
        %812 = vmatpush.xpose.msra.mxu0 %v735
        %813 = vmatpush.xpose.msra.mxu0 %v729
        %814 = vmatmul.f32.gmra.mxu0 %v741
        %v815 = vpop.f32.mrf.mxu0
        %v816 = vadd.f32 %v796, %v815
        %817 = vdwg.mxu0
        %818 = vmatpush.xpose.msra.mxu0 0.0
        %819 = vmatpush.xpose.msra.mxu0 0.0
        %820 = vmatpush.xpose.msra.mxu0 0.0
        %821 = vmatpush.xpose.msra.mxu0 0.0
        %822 = vmatpush.xpose.msra.mxu0 0.0
        %823 = vmatpush.xpose.msra.mxu0 0.0
        %824 = vmatpush.xpose.msra.mxu0 0.0
        %825 = vmatpush.xpose.msra.mxu0 0.0
        %826 = vmatpush.xpose.msra.mxu0 0.0
        %827 = vmatpush.xpose.msra.mxu0 0.0
        %828 = vmatpush.xpose.msra.mxu0 0.0
        %829 = vmatpush.xpose.msra.mxu0 0.0
        %830 = vmatpush.xpose.msra.mxu0 0.0
        %831 = vmatpush.xpose.msra.mxu0 0.0
        %832 = vmatpush.xpose.msra.mxu0 %v736
        %833 = vmatpush.xpose.msra.mxu0 %v730
        %834 = vmatmul.f32.gmra.mxu0 %v742
        %v835 = vpop.f32.mrf.mxu0
        %v836 = vadd.f32 %v816, %v835
        %837 = vdwg.mxu0
        %838 = vmatpush.xpose.msra.mxu0 0.0
        %839 = vmatpush.xpose.msra.mxu0 0.0
        %840 = vmatpush.xpose.msra.mxu0 0.0
        %841 = vmatpush.xpose.msra.mxu0 0.0
        %842 = vmatpush.xpose.msra.mxu0 0.0
        %843 = vmatpush.xpose.msra.mxu0 0.0
        %844 = vmatpush.xpose.msra.mxu0 0.0
        %845 = vmatpush.xpose.msra.mxu0 0.0
        %846 = vmatpush.xpose.msra.mxu0 0.0
        %847 = vmatpush.xpose.msra.mxu0 0.0
        %848 = vmatpush.xpose.msra.mxu0 0.0
        %849 = vmatpush.xpose.msra.mxu0 0.0
        %850 = vmatpush.xpose.msra.mxu0 0.0
        %851 = vmatpush.xpose.msra.mxu0 0.0
        %852 = vmatpush.xpose.msra.mxu0 %v737
        %853 = vmatpush.xpose.msra.mxu0 %v731
        %854 = vmatmul.f32.gmra.mxu0 %v743
        %v855 = vpop.f32.mrf.mxu0
        %v856 = vadd.f32 %v836, %v855
        %857 = vdwg.mxu0
        %858 = vmatpush.xpose.msra.mxu0 0.0
        %859 = vmatpush.xpose.msra.mxu0 0.0
        %860 = vmatpush.xpose.msra.mxu0 0.0
        %861 = vmatpush.xpose.msra.mxu0 0.0
        %862 = vmatpush.xpose.msra.mxu0 0.0
        %863 = vmatpush.xpose.msra.mxu0 0.0
        %864 = vmatpush.xpose.msra.mxu0 0.0
        %865 = vmatpush.xpose.msra.mxu0 0.0
        %866 = vmatpush.xpose.msra.mxu0 0.0
        %867 = vmatpush.xpose.msra.mxu0 0.0
        %868 = vmatpush.xpose.msra.mxu0 0.0
        %869 = vmatpush.xpose.msra.mxu0 0.0
        %870 = vmatpush.xpose.msra.mxu0 0.0
        %871 = vmatpush.xpose.msra.mxu0 0.0
        %872 = vmatpush.xpose.msra.mxu0 %v756
        %873 = vmatpush.xpose.msra.mxu0 %v753
        %874 = vmatmul.f32.gmra.mxu0 %v750
        %v875 = vpop.f32.mrf.mxu0
        %v876 = vadd.f32 %v856, %v875
        %877 = vdwg.mxu0
        %v878 = vadd.f32 %v725, %v876
        %s879 = scalar_lea.vmem %s3, 288
        %v880 = vld [vmem:[%s879] sm:$0xff]
        %v881 = vld [vmem:[%s879 + $0x8] sm:$0xff]
        %v882 = vld [vmem:[%s879 + $0x10] sm:$0xff]
        %v883 = vld [vmem:[%s879 + $0x18] sm:$0xff]
        %v884 = vld [vmem:[%s879 + $0x20] sm:$0xff]
        %v885 = vld [vmem:[%s879 + $0x28] sm:$0xff]
        %v886 = vld [vmem:[%s879 + $0x30] sm:$0x3]
        %v887 = vld [vmem:[%s879 + $0x38] sm:$0x3]
        %v888 = vld [vmem:[%s879 + $0x40] sm:$0x3]
        %v889 = vld [vmem:[%s879 + $0x48] sm:$0x3]
        %v890 = vld [vmem:[%s879 + $0x50] sm:$0x3]
        %v891 = vld [vmem:[%s879 + $0x58] sm:$0x3]
        %v892 = vrot.slane %v412, 3
        %v893 = vrot.slane %v413, 3
        %v894 = vrot.slane %v414, 3
        %v895 = vrot.slane %v415, 3
        %v896 = vrot.slane %v416, 3
        %v897 = vrot.slane %v417, 3
        %v903 = vsel %vm437, %v897, 0
        %v906 = vsel %vm437, %v885, 0
        %v909 = vsel %vm437, %v891, 0
        %911 = vmatpush.xpose.msra.mxu0 0.0
        %912 = vmatpush.xpose.msra.mxu0 0.0
        %913 = vmatpush.xpose.msra.mxu0 0.0
        %914 = vmatpush.xpose.msra.mxu0 0.0
        %915 = vmatpush.xpose.msra.mxu0 0.0
        %916 = vmatpush.xpose.msra.mxu0 0.0
        %917 = vmatpush.xpose.msra.mxu0 0.0
        %918 = vmatpush.xpose.msra.mxu0 0.0
        %919 = vmatpush.xpose.msra.mxu0 0.0
        %920 = vmatpush.xpose.msra.mxu0 0.0
        %921 = vmatpush.xpose.msra.mxu0 0.0
        %922 = vmatpush.xpose.msra.mxu0 0.0
        %923 = vmatpush.xpose.msra.mxu0 0.0
        %924 = vmatpush.xpose.msra.mxu0 0.0
        %925 = vmatpush.xpose.msra.mxu0 %v886
        %926 = vmatpush.xpose.msra.mxu0 %v880
        %927 = vmatmul.f32.gmra.mxu0 %v892
        %v928 = vpop.f32.mrf.mxu0
        %v929 = vadd.f32 0.0, %v928
        %930 = vdwg.mxu0
        %931 = vmatpush.xpose.msra.mxu0 0.0
        %932 = vmatpush.xpose.msra.mxu0 0.0
        %933 = vmatpush.xpose.msra.mxu0 0.0
        %934 = vmatpush.xpose.msra.mxu0 0.0
        %935 = vmatpush.xpose.msra.mxu0 0.0
        %936 = vmatpush.xpose.msra.mxu0 0.0
        %937 = vmatpush.xpose.msra.mxu0 0.0
        %938 = vmatpush.xpose.msra.mxu0 0.0
        %939 = vmatpush.xpose.msra.mxu0 0.0
        %940 = vmatpush.xpose.msra.mxu0 0.0
        %941 = vmatpush.xpose.msra.mxu0 0.0
        %942 = vmatpush.xpose.msra.mxu0 0.0
        %943 = vmatpush.xpose.msra.mxu0 0.0
        %944 = vmatpush.xpose.msra.mxu0 0.0
        %945 = vmatpush.xpose.msra.mxu0 %v887
        %946 = vmatpush.xpose.msra.mxu0 %v881
        %947 = vmatmul.f32.gmra.mxu0 %v893
        %v948 = vpop.f32.mrf.mxu0
        %v949 = vadd.f32 %v929, %v948
        %950 = vdwg.mxu0
        %951 = vmatpush.xpose.msra.mxu0 0.0
        %952 = vmatpush.xpose.msra.mxu0 0.0
        %953 = vmatpush.xpose.msra.mxu0 0.0
        %954 = vmatpush.xpose.msra.mxu0 0.0
        %955 = vmatpush.xpose.msra.mxu0 0.0
        %956 = vmatpush.xpose.msra.mxu0 0.0
        %957 = vmatpush.xpose.msra.mxu0 0.0
        %958 = vmatpush.xpose.msra.mxu0 0.0
        %959 = vmatpush.xpose.msra.mxu0 0.0
        %960 = vmatpush.xpose.msra.mxu0 0.0
        %961 = vmatpush.xpose.msra.mxu0 0.0
        %962 = vmatpush.xpose.msra.mxu0 0.0
        %963 = vmatpush.xpose.msra.mxu0 0.0
        %964 = vmatpush.xpose.msra.mxu0 0.0
        %965 = vmatpush.xpose.msra.mxu0 %v888
        %966 = vmatpush.xpose.msra.mxu0 %v882
        %967 = vmatmul.f32.gmra.mxu0 %v894
        %v968 = vpop.f32.mrf.mxu0
        %v969 = vadd.f32 %v949, %v968
        %970 = vdwg.mxu0
        %971 = vmatpush.xpose.msra.mxu0 0.0
        %972 = vmatpush.xpose.msra.mxu0 0.0
        %973 = vmatpush.xpose.msra.mxu0 0.0
        %974 = vmatpush.xpose.msra.mxu0 0.0
        %975 = vmatpush.xpose.msra.mxu0 0.0
        %976 = vmatpush.xpose.msra.mxu0 0.0
        %977 = vmatpush.xpose.msra.mxu0 0.0
        %978 = vmatpush.xpose.msra.mxu0 0.0
        %979 = vmatpush.xpose.msra.mxu0 0.0
        %980 = vmatpush.xpose.msra.mxu0 0.0
        %981 = vmatpush.xpose.msra.mxu0 0.0
        %982 = vmatpush.xpose.msra.mxu0 0.0
        %983 = vmatpush.xpose.msra.mxu0 0.0
        %984 = vmatpush.xpose.msra.mxu0 0.0
        %985 = vmatpush.xpose.msra.mxu0 %v889
        %986 = vmatpush.xpose.msra.mxu0 %v883
        %987 = vmatmul.f32.gmra.mxu0 %v895
        %v988 = vpop.f32.mrf.mxu0
        %v989 = vadd.f32 %v969, %v988
        %990 = vdwg.mxu0
        %991 = vmatpush.xpose.msra.mxu0 0.0
        %992 = vmatpush.xpose.msra.mxu0 0.0
        %993 = vmatpush.xpose.msra.mxu0 0.0
        %994 = vmatpush.xpose.msra.mxu0 0.0
        %995 = vmatpush.xpose.msra.mxu0 0.0
        %996 = vmatpush.xpose.msra.mxu0 0.0
        %997 = vmatpush.xpose.msra.mxu0 0.0
        %998 = vmatpush.xpose.msra.mxu0 0.0
        %999 = vmatpush.xpose.msra.mxu0 0.0
        %1000 = vmatpush.xpose.msra.mxu0 0.0
        %1001 = vmatpush.xpose.msra.mxu0 0.0
        %1002 = vmatpush.xpose.msra.mxu0 0.0
        %1003 = vmatpush.xpose.msra.mxu0 0.0
        %1004 = vmatpush.xpose.msra.mxu0 0.0
        %1005 = vmatpush.xpose.msra.mxu0 %v890
        %1006 = vmatpush.xpose.msra.mxu0 %v884
        %1007 = vmatmul.f32.gmra.mxu0 %v896
        %v1008 = vpop.f32.mrf.mxu0
        %v1009 = vadd.f32 %v989, %v1008
        %1010 = vdwg.mxu0
        %1011 = vmatpush.xpose.msra.mxu0 0.0
        %1012 = vmatpush.xpose.msra.mxu0 0.0
        %1013 = vmatpush.xpose.msra.mxu0 0.0
        %1014 = vmatpush.xpose.msra.mxu0 0.0
        %1015 = vmatpush.xpose.msra.mxu0 0.0
        %1016 = vmatpush.xpose.msra.mxu0 0.0
        %1017 = vmatpush.xpose.msra.mxu0 0.0
        %1018 = vmatpush.xpose.msra.mxu0 0.0
        %1019 = vmatpush.xpose.msra.mxu0 0.0
        %1020 = vmatpush.xpose.msra.mxu0 0.0
        %1021 = vmatpush.xpose.msra.mxu0 0.0
        %1022 = vmatpush.xpose.msra.mxu0 0.0
        %1023 = vmatpush.xpose.msra.mxu0 0.0
        %1024 = vmatpush.xpose.msra.mxu0 0.0
        %1025 = vmatpush.xpose.msra.mxu0 %v909
        %1026 = vmatpush.xpose.msra.mxu0 %v906
        %1027 = vmatmul.f32.gmra.mxu0 %v903
        %v1028 = vpop.f32.mrf.mxu0
        %v1029 = vadd.f32 %v1009, %v1028
        %1030 = vdwg.mxu0
        %v1031 = vadd.f32 %v878, %v1029
        %s1032 = scalar_lea.vmem %s3, 384
        %v1033 = vld [vmem:[%s1032] sm:$0xff]
        %v1034 = vld [vmem:[%s1032 + $0x8] sm:$0xff]
        %v1035 = vld [vmem:[%s1032 + $0x10] sm:$0xff]
        %v1036 = vld [vmem:[%s1032 + $0x18] sm:$0xff]
        %v1037 = vld [vmem:[%s1032 + $0x20] sm:$0xff]
        %v1038 = vld [vmem:[%s1032 + $0x28] sm:$0xff]
        %v1039 = vld [vmem:[%s1032 + $0x30] sm:$0x3]
        %v1040 = vld [vmem:[%s1032 + $0x38] sm:$0x3]
        %v1041 = vld [vmem:[%s1032 + $0x40] sm:$0x3]
        %v1042 = vld [vmem:[%s1032 + $0x48] sm:$0x3]
        %v1043 = vld [vmem:[%s1032 + $0x50] sm:$0x3]
        %v1044 = vld [vmem:[%s1032 + $0x58] sm:$0x3]
        %v1045 = vrot.slane %v412, 4
        %v1046 = vrot.slane %v413, 4
        %v1047 = vrot.slane %v414, 4
        %v1048 = vrot.slane %v415, 4
        %v1049 = vrot.slane %v416, 4
        %v1050 = vrot.slane %v417, 4
        %v1056 = vsel %vm437, %v1050, 0
        %v1059 = vsel %vm437, %v1038, 0
        %v1062 = vsel %vm437, %v1044, 0
        %1064 = vmatpush.xpose.msra.mxu0 0.0
        %1065 = vmatpush.xpose.msra.mxu0 0.0
        %1066 = vmatpush.xpose.msra.mxu0 0.0
        %1067 = vmatpush.xpose.msra.mxu0 0.0
        %1068 = vmatpush.xpose.msra.mxu0 0.0
        %1069 = vmatpush.xpose.msra.mxu0 0.0
        %1070 = vmatpush.xpose.msra.mxu0 0.0
        %1071 = vmatpush.xpose.msra.mxu0 0.0
        %1072 = vmatpush.xpose.msra.mxu0 0.0
        %1073 = vmatpush.xpose.msra.mxu0 0.0
        %1074 = vmatpush.xpose.msra.mxu0 0.0
        %1075 = vmatpush.xpose.msra.mxu0 0.0
        %1076 = vmatpush.xpose.msra.mxu0 0.0
        %1077 = vmatpush.xpose.msra.mxu0 0.0
        %1078 = vmatpush.xpose.msra.mxu0 %v1039
        %1079 = vmatpush.xpose.msra.mxu0 %v1033
        %1080 = vmatmul.f32.gmra.mxu0 %v1045
        %v1081 = vpop.f32.mrf.mxu0
        %v1082 = vadd.f32 0.0, %v1081
        %1083 = vdwg.mxu0
        %1084 = vmatpush.xpose.msra.mxu0 0.0
        %1085 = vmatpush.xpose.msra.mxu0 0.0
        %1086 = vmatpush.xpose.msra.mxu0 0.0
        %1087 = vmatpush.xpose.msra.mxu0 0.0
        %1088 = vmatpush.xpose.msra.mxu0 0.0
        %1089 = vmatpush.xpose.msra.mxu0 0.0
        %1090 = vmatpush.xpose.msra.mxu0 0.0
        %1091 = vmatpush.xpose.msra.mxu0 0.0
        %1092 = vmatpush.xpose.msra.mxu0 0.0
        %1093 = vmatpush.xpose.msra.mxu0 0.0
        %1094 = vmatpush.xpose.msra.mxu0 0.0
        %1095 = vmatpush.xpose.msra.mxu0 0.0
        %1096 = vmatpush.xpose.msra.mxu0 0.0
        %1097 = vmatpush.xpose.msra.mxu0 0.0
        %1098 = vmatpush.xpose.msra.mxu0 %v1040
        %1099 = vmatpush.xpose.msra.mxu0 %v1034
        %1100 = vmatmul.f32.gmra.mxu0 %v1046
        %v1101 = vpop.f32.mrf.mxu0
        %v1102 = vadd.f32 %v1082, %v1101
        %1103 = vdwg.mxu0
        %1104 = vmatpush.xpose.msra.mxu0 0.0
        %1105 = vmatpush.xpose.msra.mxu0 0.0
        %1106 = vmatpush.xpose.msra.mxu0 0.0
        %1107 = vmatpush.xpose.msra.mxu0 0.0
        %1108 = vmatpush.xpose.msra.mxu0 0.0
        %1109 = vmatpush.xpose.msra.mxu0 0.0
        %1110 = vmatpush.xpose.msra.mxu0 0.0
        %1111 = vmatpush.xpose.msra.mxu0 0.0
        %1112 = vmatpush.xpose.msra.mxu0 0.0
        %1113 = vmatpush.xpose.msra.mxu0 0.0
        %1114 = vmatpush.xpose.msra.mxu0 0.0
        %1115 = vmatpush.xpose.msra.mxu0 0.0
        %1116 = vmatpush.xpose.msra.mxu0 0.0
        %1117 = vmatpush.xpose.msra.mxu0 0.0
        %1118 = vmatpush.xpose.msra.mxu0 %v1041
        %1119 = vmatpush.xpose.msra.mxu0 %v1035
        %1120 = vmatmul.f32.gmra.mxu0 %v1047
        %v1121 = vpop.f32.mrf.mxu0
        %v1122 = vadd.f32 %v1102, %v1121
        %1123 = vdwg.mxu0
        %1124 = vmatpush.xpose.msra.mxu0 0.0
        %1125 = vmatpush.xpose.msra.mxu0 0.0
        %1126 = vmatpush.xpose.msra.mxu0 0.0
        %1127 = vmatpush.xpose.msra.mxu0 0.0
        %1128 = vmatpush.xpose.msra.mxu0 0.0
        %1129 = vmatpush.xpose.msra.mxu0 0.0
        %1130 = vmatpush.xpose.msra.mxu0 0.0
        %1131 = vmatpush.xpose.msra.mxu0 0.0
        %1132 = vmatpush.xpose.msra.mxu0 0.0
        %1133 = vmatpush.xpose.msra.mxu0 0.0
        %1134 = vmatpush.xpose.msra.mxu0 0.0
        %1135 = vmatpush.xpose.msra.mxu0 0.0
        %1136 = vmatpush.xpose.msra.mxu0 0.0
        %1137 = vmatpush.xpose.msra.mxu0 0.0
        %1138 = vmatpush.xpose.msra.mxu0 %v1042
        %1139 = vmatpush.xpose.msra.mxu0 %v1036
        %1140 = vmatmul.f32.gmra.mxu0 %v1048
        %v1141 = vpop.f32.mrf.mxu0
        %v1142 = vadd.f32 %v1122, %v1141
        %1143 = vdwg.mxu0
        %1144 = vmatpush.xpose.msra.mxu0 0.0
        %1145 = vmatpush.xpose.msra.mxu0 0.0
        %1146 = vmatpush.xpose.msra.mxu0 0.0
        %1147 = vmatpush.xpose.msra.mxu0 0.0
        %1148 = vmatpush.xpose.msra.mxu0 0.0
        %1149 = vmatpush.xpose.msra.mxu0 0.0
        %1150 = vmatpush.xpose.msra.mxu0 0.0
        %1151 = vmatpush.xpose.msra.mxu0 0.0
        %1152 = vmatpush.xpose.msra.mxu0 0.0
        %1153 = vmatpush.xpose.msra.mxu0 0.0
        %1154 = vmatpush.xpose.msra.mxu0 0.0
        %1155 = vmatpush.xpose.msra.mxu0 0.0
        %1156 = vmatpush.xpose.msra.mxu0 0.0
        %1157 = vmatpush.xpose.msra.mxu0 0.0
        %1158 = vmatpush.xpose.msra.mxu0 %v1043
        %1159 = vmatpush.xpose.msra.mxu0 %v1037
        %1160 = vmatmul.f32.gmra.mxu0 %v1049
        %v1161 = vpop.f32.mrf.mxu0
        %v1162 = vadd.f32 %v1142, %v1161
        %1163 = vdwg.mxu0
        %1164 = vmatpush.xpose.msra.mxu0 0.0
        %1165 = vmatpush.xpose.msra.mxu0 0.0
        %1166 = vmatpush.xpose.msra.mxu0 0.0
        %1167 = vmatpush.xpose.msra.mxu0 0.0
        %1168 = vmatpush.xpose.msra.mxu0 0.0
        %1169 = vmatpush.xpose.msra.mxu0 0.0
        %1170 = vmatpush.xpose.msra.mxu0 0.0
        %1171 = vmatpush.xpose.msra.mxu0 0.0
        %1172 = vmatpush.xpose.msra.mxu0 0.0
        %1173 = vmatpush.xpose.msra.mxu0 0.0
        %1174 = vmatpush.xpose.msra.mxu0 0.0
        %1175 = vmatpush.xpose.msra.mxu0 0.0
        %1176 = vmatpush.xpose.msra.mxu0 0.0
        %1177 = vmatpush.xpose.msra.mxu0 0.0
        %1178 = vmatpush.xpose.msra.mxu0 %v1062
        %1179 = vmatpush.xpose.msra.mxu0 %v1059
        %1180 = vmatmul.f32.gmra.mxu0 %v1056
        %v1181 = vpop.f32.mrf.mxu0
        %v1182 = vadd.f32 %v1162, %v1181
        %1183 = vdwg.mxu0
        %v1184 = vadd.f32 %v1031, %v1182
        %s1185 = scalar_lea.vmem %s3, 480
        %v1186 = vld [vmem:[%s1185] sm:$0xff]
        %v1187 = vld [vmem:[%s1185 + $0x8] sm:$0xff]
        %v1188 = vld [vmem:[%s1185 + $0x10] sm:$0xff]
        %v1189 = vld [vmem:[%s1185 + $0x18] sm:$0xff]
        %v1190 = vld [vmem:[%s1185 + $0x20] sm:$0xff]
        %v1191 = vld [vmem:[%s1185 + $0x28] sm:$0xff]
        %v1192 = vld [vmem:[%s1185 + $0x30] sm:$0x3]
        %v1193 = vld [vmem:[%s1185 + $0x38] sm:$0x3]
        %v1194 = vld [vmem:[%s1185 + $0x40] sm:$0x3]
        %v1195 = vld [vmem:[%s1185 + $0x48] sm:$0x3]
        %v1196 = vld [vmem:[%s1185 + $0x50] sm:$0x3]
        %v1197 = vld [vmem:[%s1185 + $0x58] sm:$0x3]
        %v1198 = vrot.slane %v412, 5
        %v1199 = vrot.slane %v413, 5
        %v1200 = vrot.slane %v414, 5
        %v1201 = vrot.slane %v415, 5
        %v1202 = vrot.slane %v416, 5
        %v1203 = vrot.slane %v417, 5
        %v1209 = vsel %vm437, %v1203, 0
        %v1212 = vsel %vm437, %v1191, 0
        %v1215 = vsel %vm437, %v1197, 0
        %1217 = vmatpush.xpose.msra.mxu0 0.0
        %1218 = vmatpush.xpose.msra.mxu0 0.0
        %1219 = vmatpush.xpose.msra.mxu0 0.0
        %1220 = vmatpush.xpose.msra.mxu0 0.0
        %1221 = vmatpush.xpose.msra.mxu0 0.0
        %1222 = vmatpush.xpose.msra.mxu0 0.0
        %1223 = vmatpush.xpose.msra.mxu0 0.0
        %1224 = vmatpush.xpose.msra.mxu0 0.0
        %1225 = vmatpush.xpose.msra.mxu0 0.0
        %1226 = vmatpush.xpose.msra.mxu0 0.0
        %1227 = vmatpush.xpose.msra.mxu0 0.0
        %1228 = vmatpush.xpose.msra.mxu0 0.0
        %1229 = vmatpush.xpose.msra.mxu0 0.0
        %1230 = vmatpush.xpose.msra.mxu0 0.0
        %1231 = vmatpush.xpose.msra.mxu0 %v1192
        %1232 = vmatpush.xpose.msra.mxu0 %v1186
        %1233 = vmatmul.f32.gmra.mxu0 %v1198
        %v1234 = vpop.f32.mrf.mxu0
        %v1235 = vadd.f32 0.0, %v1234
        %1236 = vdwg.mxu0
        %1237 = vmatpush.xpose.msra.mxu0 0.0
        %1238 = vmatpush.xpose.msra.mxu0 0.0
        %1239 = vmatpush.xpose.msra.mxu0 0.0
        %1240 = vmatpush.xpose.msra.mxu0 0.0
        %1241 = vmatpush.xpose.msra.mxu0 0.0
        %1242 = vmatpush.xpose.msra.mxu0 0.0
        %1243 = vmatpush.xpose.msra.mxu0 0.0
        %1244 = vmatpush.xpose.msra.mxu0 0.0
        %1245 = vmatpush.xpose.msra.mxu0 0.0
        %1246 = vmatpush.xpose.msra.mxu0 0.0
        %1247 = vmatpush.xpose.msra.mxu0 0.0
        %1248 = vmatpush.xpose.msra.mxu0 0.0
        %1249 = vmatpush.xpose.msra.mxu0 0.0
        %1250 = vmatpush.xpose.msra.mxu0 0.0
        %1251 = vmatpush.xpose.msra.mxu0 %v1193
        %1252 = vmatpush.xpose.msra.mxu0 %v1187
        %1253 = vmatmul.f32.gmra.mxu0 %v1199
        %v1254 = vpop.f32.mrf.mxu0
        %v1255 = vadd.f32 %v1235, %v1254
        %1256 = vdwg.mxu0
        %1257 = vmatpush.xpose.msra.mxu0 0.0
        %1258 = vmatpush.xpose.msra.mxu0 0.0
        %1259 = vmatpush.xpose.msra.mxu0 0.0
        %1260 = vmatpush.xpose.msra.mxu0 0.0
        %1261 = vmatpush.xpose.msra.mxu0 0.0
        %1262 = vmatpush.xpose.msra.mxu0 0.0
        %1263 = vmatpush.xpose.msra.mxu0 0.0
        %1264 = vmatpush.xpose.msra.mxu0 0.0
        %1265 = vmatpush.xpose.msra.mxu0 0.0
        %1266 = vmatpush.xpose.msra.mxu0 0.0
        %1267 = vmatpush.xpose.msra.mxu0 0.0
        %1268 = vmatpush.xpose.msra.mxu0 0.0
        %1269 = vmatpush.xpose.msra.mxu0 0.0
        %1270 = vmatpush.xpose.msra.mxu0 0.0
        %1271 = vmatpush.xpose.msra.mxu0 %v1194
        %1272 = vmatpush.xpose.msra.mxu0 %v1188
        %1273 = vmatmul.f32.gmra.mxu0 %v1200
        %v1274 = vpop.f32.mrf.mxu0
        %v1275 = vadd.f32 %v1255, %v1274
        %1276 = vdwg.mxu0
        %1277 = vmatpush.xpose.msra.mxu0 0.0
        %1278 = vmatpush.xpose.msra.mxu0 0.0
        %1279 = vmatpush.xpose.msra.mxu0 0.0
        %1280 = vmatpush.xpose.msra.mxu0 0.0
        %1281 = vmatpush.xpose.msra.mxu0 0.0
        %1282 = vmatpush.xpose.msra.mxu0 0.0
        %1283 = vmatpush.xpose.msra.mxu0 0.0
        %1284 = vmatpush.xpose.msra.mxu0 0.0
        %1285 = vmatpush.xpose.msra.mxu0 0.0
        %1286 = vmatpush.xpose.msra.mxu0 0.0
        %1287 = vmatpush.xpose.msra.mxu0 0.0
        %1288 = vmatpush.xpose.msra.mxu0 0.0
        %1289 = vmatpush.xpose.msra.mxu0 0.0
        %1290 = vmatpush.xpose.msra.mxu0 0.0
        %1291 = vmatpush.xpose.msra.mxu0 %v1195
        %1292 = vmatpush.xpose.msra.mxu0 %v1189
        %1293 = vmatmul.f32.gmra.mxu0 %v1201
        %v1294 = vpop.f32.mrf.mxu0
        %v1295 = vadd.f32 %v1275, %v1294
        %1296 = vdwg.mxu0
        %1297 = vmatpush.xpose.msra.mxu0 0.0
        %1298 = vmatpush.xpose.msra.mxu0 0.0
        %1299 = vmatpush.xpose.msra.mxu0 0.0
        %1300 = vmatpush.xpose.msra.mxu0 0.0
        %1301 = vmatpush.xpose.msra.mxu0 0.0
        %1302 = vmatpush.xpose.msra.mxu0 0.0
        %1303 = vmatpush.xpose.msra.mxu0 0.0
        %1304 = vmatpush.xpose.msra.mxu0 0.0
        %1305 = vmatpush.xpose.msra.mxu0 0.0
        %1306 = vmatpush.xpose.msra.mxu0 0.0
        %1307 = vmatpush.xpose.msra.mxu0 0.0
        %1308 = vmatpush.xpose.msra.mxu0 0.0
        %1309 = vmatpush.xpose.msra.mxu0 0.0
        %1310 = vmatpush.xpose.msra.mxu0 0.0
        %1311 = vmatpush.xpose.msra.mxu0 %v1196
        %1312 = vmatpush.xpose.msra.mxu0 %v1190
        %1313 = vmatmul.f32.gmra.mxu0 %v1202
        %v1314 = vpop.f32.mrf.mxu0
        %v1315 = vadd.f32 %v1295, %v1314
        %1316 = vdwg.mxu0
        %1317 = vmatpush.xpose.msra.mxu0 0.0
        %1318 = vmatpush.xpose.msra.mxu0 0.0
        %1319 = vmatpush.xpose.msra.mxu0 0.0
        %1320 = vmatpush.xpose.msra.mxu0 0.0
        %1321 = vmatpush.xpose.msra.mxu0 0.0
        %1322 = vmatpush.xpose.msra.mxu0 0.0
        %1323 = vmatpush.xpose.msra.mxu0 0.0
        %1324 = vmatpush.xpose.msra.mxu0 0.0
        %1325 = vmatpush.xpose.msra.mxu0 0.0
        %1326 = vmatpush.xpose.msra.mxu0 0.0
        %1327 = vmatpush.xpose.msra.mxu0 0.0
        %1328 = vmatpush.xpose.msra.mxu0 0.0
        %1329 = vmatpush.xpose.msra.mxu0 0.0
        %1330 = vmatpush.xpose.msra.mxu0 0.0
        %1331 = vmatpush.xpose.msra.mxu0 %v1215
        %1332 = vmatpush.xpose.msra.mxu0 %v1212
        %1333 = vmatmul.f32.gmra.mxu0 %v1209
        %v1334 = vpop.f32.mrf.mxu0
        %v1335 = vadd.f32 %v1315, %v1334
        %1336 = vdwg.mxu0
        %v1337 = vadd.f32 %v1184, %v1335
        %s1338 = scalar_lea.vmem %s3, 576
        %v1339 = vld [vmem:[%s1338] sm:$0xff]
        %v1340 = vld [vmem:[%s1338 + $0x8] sm:$0xff]
        %v1341 = vld [vmem:[%s1338 + $0x10] sm:$0xff]
        %v1342 = vld [vmem:[%s1338 + $0x18] sm:$0xff]
        %v1343 = vld [vmem:[%s1338 + $0x20] sm:$0xff]
        %v1344 = vld [vmem:[%s1338 + $0x28] sm:$0xff]
        %v1345 = vld [vmem:[%s1338 + $0x30] sm:$0x3]
        %v1346 = vld [vmem:[%s1338 + $0x38] sm:$0x3]
        %v1347 = vld [vmem:[%s1338 + $0x40] sm:$0x3]
        %v1348 = vld [vmem:[%s1338 + $0x48] sm:$0x3]
        %v1349 = vld [vmem:[%s1338 + $0x50] sm:$0x3]
        %v1350 = vld [vmem:[%s1338 + $0x58] sm:$0x3]
        %v1351 = vrot.slane %v412, 6
        %v1352 = vrot.slane %v413, 6
        %v1353 = vrot.slane %v414, 6
        %v1354 = vrot.slane %v415, 6
        %v1355 = vrot.slane %v416, 6
        %v1356 = vrot.slane %v417, 6
        %v1362 = vsel %vm437, %v1356, 0
        %v1365 = vsel %vm437, %v1344, 0
        %v1368 = vsel %vm437, %v1350, 0
        %1370 = vmatpush.xpose.msra.mxu0 0.0
        %1371 = vmatpush.xpose.msra.mxu0 0.0
        %1372 = vmatpush.xpose.msra.mxu0 0.0
        %1373 = vmatpush.xpose.msra.mxu0 0.0
        %1374 = vmatpush.xpose.msra.mxu0 0.0
        %1375 = vmatpush.xpose.msra.mxu0 0.0
        %1376 = vmatpush.xpose.msra.mxu0 0.0
        %1377 = vmatpush.xpose.msra.mxu0 0.0
        %1378 = vmatpush.xpose.msra.mxu0 0.0
        %1379 = vmatpush.xpose.msra.mxu0 0.0
        %1380 = vmatpush.xpose.msra.mxu0 0.0
        %1381 = vmatpush.xpose.msra.mxu0 0.0
        %1382 = vmatpush.xpose.msra.mxu0 0.0
        %1383 = vmatpush.xpose.msra.mxu0 0.0
        %1384 = vmatpush.xpose.msra.mxu0 %v1345
        %1385 = vmatpush.xpose.msra.mxu0 %v1339
        %1386 = vmatmul.f32.gmra.mxu0 %v1351
        %v1387 = vpop.f32.mrf.mxu0
        %v1388 = vadd.f32 0.0, %v1387
        %1389 = vdwg.mxu0
        %1390 = vmatpush.xpose.msra.mxu0 0.0
        %1391 = vmatpush.xpose.msra.mxu0 0.0
        %1392 = vmatpush.xpose.msra.mxu0 0.0
        %1393 = vmatpush.xpose.msra.mxu0 0.0
        %1394 = vmatpush.xpose.msra.mxu0 0.0
        %1395 = vmatpush.xpose.msra.mxu0 0.0
        %1396 = vmatpush.xpose.msra.mxu0 0.0
        %1397 = vmatpush.xpose.msra.mxu0 0.0
        %1398 = vmatpush.xpose.msra.mxu0 0.0
        %1399 = vmatpush.xpose.msra.mxu0 0.0
        %1400 = vmatpush.xpose.msra.mxu0 0.0
        %1401 = vmatpush.xpose.msra.mxu0 0.0
        %1402 = vmatpush.xpose.msra.mxu0 0.0
        %1403 = vmatpush.xpose.msra.mxu0 0.0
        %1404 = vmatpush.xpose.msra.mxu0 %v1346
        %1405 = vmatpush.xpose.msra.mxu0 %v1340
        %1406 = vmatmul.f32.gmra.mxu0 %v1352
        %v1407 = vpop.f32.mrf.mxu0
        %v1408 = vadd.f32 %v1388, %v1407
        %1409 = vdwg.mxu0
        %1410 = vmatpush.xpose.msra.mxu0 0.0
        %1411 = vmatpush.xpose.msra.mxu0 0.0
        %1412 = vmatpush.xpose.msra.mxu0 0.0
        %1413 = vmatpush.xpose.msra.mxu0 0.0
        %1414 = vmatpush.xpose.msra.mxu0 0.0
        %1415 = vmatpush.xpose.msra.mxu0 0.0
        %1416 = vmatpush.xpose.msra.mxu0 0.0
        %1417 = vmatpush.xpose.msra.mxu0 0.0
        %1418 = vmatpush.xpose.msra.mxu0 0.0
        %1419 = vmatpush.xpose.msra.mxu0 0.0
        %1420 = vmatpush.xpose.msra.mxu0 0.0
        %1421 = vmatpush.xpose.msra.mxu0 0.0
        %1422 = vmatpush.xpose.msra.mxu0 0.0
        %1423 = vmatpush.xpose.msra.mxu0 0.0
        %1424 = vmatpush.xpose.msra.mxu0 %v1347
        %1425 = vmatpush.xpose.msra.mxu0 %v1341
        %1426 = vmatmul.f32.gmra.mxu0 %v1353
        %v1427 = vpop.f32.mrf.mxu0
        %v1428 = vadd.f32 %v1408, %v1427
        %1429 = vdwg.mxu0
        %1430 = vmatpush.xpose.msra.mxu0 0.0
        %1431 = vmatpush.xpose.msra.mxu0 0.0
        %1432 = vmatpush.xpose.msra.mxu0 0.0
        %1433 = vmatpush.xpose.msra.mxu0 0.0
        %1434 = vmatpush.xpose.msra.mxu0 0.0
        %1435 = vmatpush.xpose.msra.mxu0 0.0
        %1436 = vmatpush.xpose.msra.mxu0 0.0
        %1437 = vmatpush.xpose.msra.mxu0 0.0
        %1438 = vmatpush.xpose.msra.mxu0 0.0
        %1439 = vmatpush.xpose.msra.mxu0 0.0
        %1440 = vmatpush.xpose.msra.mxu0 0.0
        %1441 = vmatpush.xpose.msra.mxu0 0.0
        %1442 = vmatpush.xpose.msra.mxu0 0.0
        %1443 = vmatpush.xpose.msra.mxu0 0.0
        %1444 = vmatpush.xpose.msra.mxu0 %v1348
        %1445 = vmatpush.xpose.msra.mxu0 %v1342
        %1446 = vmatmul.f32.gmra.mxu0 %v1354
        %v1447 = vpop.f32.mrf.mxu0
        %v1448 = vadd.f32 %v1428, %v1447
        %1449 = vdwg.mxu0
        %1450 = vmatpush.xpose.msra.mxu0 0.0
        %1451 = vmatpush.xpose.msra.mxu0 0.0
        %1452 = vmatpush.xpose.msra.mxu0 0.0
        %1453 = vmatpush.xpose.msra.mxu0 0.0
        %1454 = vmatpush.xpose.msra.mxu0 0.0
        %1455 = vmatpush.xpose.msra.mxu0 0.0
        %1456 = vmatpush.xpose.msra.mxu0 0.0
        %1457 = vmatpush.xpose.msra.mxu0 0.0
        %1458 = vmatpush.xpose.msra.mxu0 0.0
        %1459 = vmatpush.xpose.msra.mxu0 0.0
        %1460 = vmatpush.xpose.msra.mxu0 0.0
        %1461 = vmatpush.xpose.msra.mxu0 0.0
        %1462 = vmatpush.xpose.msra.mxu0 0.0
        %1463 = vmatpush.xpose.msra.mxu0 0.0
        %1464 = vmatpush.xpose.msra.mxu0 %v1349
        %1465 = vmatpush.xpose.msra.mxu0 %v1343
        %1466 = vmatmul.f32.gmra.mxu0 %v1355
        %v1467 = vpop.f32.mrf.mxu0
        %v1468 = vadd.f32 %v1448, %v1467
        %1469 = vdwg.mxu0
        %1470 = vmatpush.xpose.msra.mxu0 0.0
        %1471 = vmatpush.xpose.msra.mxu0 0.0
        %1472 = vmatpush.xpose.msra.mxu0 0.0
        %1473 = vmatpush.xpose.msra.mxu0 0.0
        %1474 = vmatpush.xpose.msra.mxu0 0.0
        %1475 = vmatpush.xpose.msra.mxu0 0.0
        %1476 = vmatpush.xpose.msra.mxu0 0.0
        %1477 = vmatpush.xpose.msra.mxu0 0.0
        %1478 = vmatpush.xpose.msra.mxu0 0.0
        %1479 = vmatpush.xpose.msra.mxu0 0.0
        %1480 = vmatpush.xpose.msra.mxu0 0.0
        %1481 = vmatpush.xpose.msra.mxu0 0.0
        %1482 = vmatpush.xpose.msra.mxu0 0.0
        %1483 = vmatpush.xpose.msra.mxu0 0.0
        %1484 = vmatpush.xpose.msra.mxu0 %v1368
        %1485 = vmatpush.xpose.msra.mxu0 %v1365
        %1486 = vmatmul.f32.gmra.mxu0 %v1362
        %v1487 = vpop.f32.mrf.mxu0
        %v1488 = vadd.f32 %v1468, %v1487
        %1489 = vdwg.mxu0
        %v1490 = vadd.f32 %v1337, %v1488
        %s1491 = scalar_lea.vmem %s3, 672
        %v1492 = vld [vmem:[%s1491] sm:$0xff]
        %v1493 = vld [vmem:[%s1491 + $0x8] sm:$0xff]
        %v1494 = vld [vmem:[%s1491 + $0x10] sm:$0xff]
        %v1495 = vld [vmem:[%s1491 + $0x18] sm:$0xff]
        %v1496 = vld [vmem:[%s1491 + $0x20] sm:$0xff]
        %v1497 = vld [vmem:[%s1491 + $0x28] sm:$0xff]
        %v1498 = vld [vmem:[%s1491 + $0x30] sm:$0x3]
        %v1499 = vld [vmem:[%s1491 + $0x38] sm:$0x3]
        %v1500 = vld [vmem:[%s1491 + $0x40] sm:$0x3]
        %v1501 = vld [vmem:[%s1491 + $0x48] sm:$0x3]
        %v1502 = vld [vmem:[%s1491 + $0x50] sm:$0x3]
        %v1503 = vld [vmem:[%s1491 + $0x58] sm:$0x3]
        %v1504 = vrot.slane %v412, 7
        %v1505 = vrot.slane %v413, 7
        %v1506 = vrot.slane %v414, 7
        %v1507 = vrot.slane %v415, 7
        %v1508 = vrot.slane %v416, 7
        %v1509 = vrot.slane %v417, 7
        %v1515 = vsel %vm437, %v1509, 0
        %v1518 = vsel %vm437, %v1497, 0
        %v1521 = vsel %vm437, %v1503, 0
        %1523 = vmatpush.xpose.msra.mxu0 0.0
        %1524 = vmatpush.xpose.msra.mxu0 0.0
        %1525 = vmatpush.xpose.msra.mxu0 0.0
        %1526 = vmatpush.xpose.msra.mxu0 0.0
        %1527 = vmatpush.xpose.msra.mxu0 0.0
        %1528 = vmatpush.xpose.msra.mxu0 0.0
        %1529 = vmatpush.xpose.msra.mxu0 0.0
        %1530 = vmatpush.xpose.msra.mxu0 0.0
        %1531 = vmatpush.xpose.msra.mxu0 0.0
        %1532 = vmatpush.xpose.msra.mxu0 0.0
        %1533 = vmatpush.xpose.msra.mxu0 0.0
        %1534 = vmatpush.xpose.msra.mxu0 0.0
        %1535 = vmatpush.xpose.msra.mxu0 0.0
        %1536 = vmatpush.xpose.msra.mxu0 0.0
        %1537 = vmatpush.xpose.msra.mxu0 %v1498
        %1538 = vmatpush.xpose.msra.mxu0 %v1492
        %1539 = vmatmul.f32.gmra.mxu0 %v1504
        %v1540 = vpop.f32.mrf.mxu0
        %v1541 = vadd.f32 0.0, %v1540
        %1542 = vdwg.mxu0
        %1543 = vmatpush.xpose.msra.mxu0 0.0
        %1544 = vmatpush.xpose.msra.mxu0 0.0
        %1545 = vmatpush.xpose.msra.mxu0 0.0
        %1546 = vmatpush.xpose.msra.mxu0 0.0
        %1547 = vmatpush.xpose.msra.mxu0 0.0
        %1548 = vmatpush.xpose.msra.mxu0 0.0
        %1549 = vmatpush.xpose.msra.mxu0 0.0
        %1550 = vmatpush.xpose.msra.mxu0 0.0
        %1551 = vmatpush.xpose.msra.mxu0 0.0
        %1552 = vmatpush.xpose.msra.mxu0 0.0
        %1553 = vmatpush.xpose.msra.mxu0 0.0
        %1554 = vmatpush.xpose.msra.mxu0 0.0
        %1555 = vmatpush.xpose.msra.mxu0 0.0
        %1556 = vmatpush.xpose.msra.mxu0 0.0
        %1557 = vmatpush.xpose.msra.mxu0 %v1499
        %1558 = vmatpush.xpose.msra.mxu0 %v1493
        %1559 = vmatmul.f32.gmra.mxu0 %v1505
        %v1560 = vpop.f32.mrf.mxu0
        %v1561 = vadd.f32 %v1541, %v1560
        %1562 = vdwg.mxu0
        %1563 = vmatpush.xpose.msra.mxu0 0.0
        %1564 = vmatpush.xpose.msra.mxu0 0.0
        %1565 = vmatpush.xpose.msra.mxu0 0.0
        %1566 = vmatpush.xpose.msra.mxu0 0.0
        %1567 = vmatpush.xpose.msra.mxu0 0.0
        %1568 = vmatpush.xpose.msra.mxu0 0.0
        %1569 = vmatpush.xpose.msra.mxu0 0.0
        %1570 = vmatpush.xpose.msra.mxu0 0.0
        %1571 = vmatpush.xpose.msra.mxu0 0.0
        %1572 = vmatpush.xpose.msra.mxu0 0.0
        %1573 = vmatpush.xpose.msra.mxu0 0.0
        %1574 = vmatpush.xpose.msra.mxu0 0.0
        %1575 = vmatpush.xpose.msra.mxu0 0.0
        %1576 = vmatpush.xpose.msra.mxu0 0.0
        %1577 = vmatpush.xpose.msra.mxu0 %v1500
        %1578 = vmatpush.xpose.msra.mxu0 %v1494
        %1579 = vmatmul.f32.gmra.mxu0 %v1506
        %v1580 = vpop.f32.mrf.mxu0
        %v1581 = vadd.f32 %v1561, %v1580
        %1582 = vdwg.mxu0
        %1583 = vmatpush.xpose.msra.mxu0 0.0
        %1584 = vmatpush.xpose.msra.mxu0 0.0
        %1585 = vmatpush.xpose.msra.mxu0 0.0
        %1586 = vmatpush.xpose.msra.mxu0 0.0
        %1587 = vmatpush.xpose.msra.mxu0 0.0
        %1588 = vmatpush.xpose.msra.mxu0 0.0
        %1589 = vmatpush.xpose.msra.mxu0 0.0
        %1590 = vmatpush.xpose.msra.mxu0 0.0
        %1591 = vmatpush.xpose.msra.mxu0 0.0
        %1592 = vmatpush.xpose.msra.mxu0 0.0
        %1593 = vmatpush.xpose.msra.mxu0 0.0
        %1594 = vmatpush.xpose.msra.mxu0 0.0
        %1595 = vmatpush.xpose.msra.mxu0 0.0
        %1596 = vmatpush.xpose.msra.mxu0 0.0
        %1597 = vmatpush.xpose.msra.mxu0 %v1501
        %1598 = vmatpush.xpose.msra.mxu0 %v1495
        %1599 = vmatmul.f32.gmra.mxu0 %v1507
        %v1600 = vpop.f32.mrf.mxu0
        %v1601 = vadd.f32 %v1581, %v1600
        %1602 = vdwg.mxu0
        %1603 = vmatpush.xpose.msra.mxu0 0.0
        %1604 = vmatpush.xpose.msra.mxu0 0.0
        %1605 = vmatpush.xpose.msra.mxu0 0.0
        %1606 = vmatpush.xpose.msra.mxu0 0.0
        %1607 = vmatpush.xpose.msra.mxu0 0.0
        %1608 = vmatpush.xpose.msra.mxu0 0.0
        %1609 = vmatpush.xpose.msra.mxu0 0.0
        %1610 = vmatpush.xpose.msra.mxu0 0.0
        %1611 = vmatpush.xpose.msra.mxu0 0.0
        %1612 = vmatpush.xpose.msra.mxu0 0.0
        %1613 = vmatpush.xpose.msra.mxu0 0.0
        %1614 = vmatpush.xpose.msra.mxu0 0.0
        %1615 = vmatpush.xpose.msra.mxu0 0.0
        %1616 = vmatpush.xpose.msra.mxu0 0.0
        %1617 = vmatpush.xpose.msra.mxu0 %v1502
        %1618 = vmatpush.xpose.msra.mxu0 %v1496
        %1619 = vmatmul.f32.gmra.mxu0 %v1508
        %v1620 = vpop.f32.mrf.mxu0
        %v1621 = vadd.f32 %v1601, %v1620
        %1622 = vdwg.mxu0
        %1623 = vmatpush.xpose.msra.mxu0 0.0
        %1624 = vmatpush.xpose.msra.mxu0 0.0
        %1625 = vmatpush.xpose.msra.mxu0 0.0
        %1626 = vmatpush.xpose.msra.mxu0 0.0
        %1627 = vmatpush.xpose.msra.mxu0 0.0
        %1628 = vmatpush.xpose.msra.mxu0 0.0
        %1629 = vmatpush.xpose.msra.mxu0 0.0
        %1630 = vmatpush.xpose.msra.mxu0 0.0
        %1631 = vmatpush.xpose.msra.mxu0 0.0
        %1632 = vmatpush.xpose.msra.mxu0 0.0
        %1633 = vmatpush.xpose.msra.mxu0 0.0
        %1634 = vmatpush.xpose.msra.mxu0 0.0
        %1635 = vmatpush.xpose.msra.mxu0 0.0
        %1636 = vmatpush.xpose.msra.mxu0 0.0
        %1637 = vmatpush.xpose.msra.mxu0 %v1521
        %1638 = vmatpush.xpose.msra.mxu0 %v1518
        %1639 = vmatmul.f32.gmra.mxu0 %v1515
        %v1640 = vpop.f32.mrf.mxu0
        %v1641 = vadd.f32 %v1621, %v1640
        %1642 = vdwg.mxu0
        %v1643 = vadd.f32 %v1490, %v1641
        %s1644 = scalar_lea.vmem %s3, 768
        %v1645 = vld [vmem:[%s1644] sm:$0xff]
        %v1646 = vld [vmem:[%s1644 + $0x8] sm:$0xff]
        %v1647 = vld [vmem:[%s1644 + $0x10] sm:$0xff]
        %v1648 = vld [vmem:[%s1644 + $0x18] sm:$0xff]
        %v1649 = vld [vmem:[%s1644 + $0x20] sm:$0xff]
        %v1650 = vld [vmem:[%s1644 + $0x28] sm:$0xff]
        %v1651 = vld [vmem:[%s1644 + $0x30] sm:$0x3]
        %v1652 = vld [vmem:[%s1644 + $0x38] sm:$0x3]
        %v1653 = vld [vmem:[%s1644 + $0x40] sm:$0x3]
        %v1654 = vld [vmem:[%s1644 + $0x48] sm:$0x3]
        %v1655 = vld [vmem:[%s1644 + $0x50] sm:$0x3]
        %v1656 = vld [vmem:[%s1644 + $0x58] sm:$0x3]
        %v1658 = vsel %vm437, %v423, 0
        %v1661 = vsel %vm437, %v1650, 0
        %v1664 = vsel %vm437, %v1656, 0
        %1666 = vmatpush.xpose.msra.mxu0 0.0
        %1667 = vmatpush.xpose.msra.mxu0 0.0
        %1668 = vmatpush.xpose.msra.mxu0 0.0
        %1669 = vmatpush.xpose.msra.mxu0 0.0
        %1670 = vmatpush.xpose.msra.mxu0 0.0
        %1671 = vmatpush.xpose.msra.mxu0 0.0
        %1672 = vmatpush.xpose.msra.mxu0 0.0
        %1673 = vmatpush.xpose.msra.mxu0 0.0
        %1674 = vmatpush.xpose.msra.mxu0 0.0
        %1675 = vmatpush.xpose.msra.mxu0 0.0
        %1676 = vmatpush.xpose.msra.mxu0 0.0
        %1677 = vmatpush.xpose.msra.mxu0 0.0
        %1678 = vmatpush.xpose.msra.mxu0 0.0
        %1679 = vmatpush.xpose.msra.mxu0 0.0
        %1680 = vmatpush.xpose.msra.mxu0 %v1651
        %1681 = vmatpush.xpose.msra.mxu0 %v1645
        %1682 = vmatmul.f32.gmra.mxu0 %v418
        %v1683 = vpop.f32.mrf.mxu0
        %v1684 = vadd.f32 0.0, %v1683
        %1685 = vdwg.mxu0
        %1686 = vmatpush.xpose.msra.mxu0 0.0
        %1687 = vmatpush.xpose.msra.mxu0 0.0
        %1688 = vmatpush.xpose.msra.mxu0 0.0
        %1689 = vmatpush.xpose.msra.mxu0 0.0
        %1690 = vmatpush.xpose.msra.mxu0 0.0
        %1691 = vmatpush.xpose.msra.mxu0 0.0
        %1692 = vmatpush.xpose.msra.mxu0 0.0
        %1693 = vmatpush.xpose.msra.mxu0 0.0
        %1694 = vmatpush.xpose.msra.mxu0 0.0
        %1695 = vmatpush.xpose.msra.mxu0 0.0
        %1696 = vmatpush.xpose.msra.mxu0 0.0
        %1697 = vmatpush.xpose.msra.mxu0 0.0
        %1698 = vmatpush.xpose.msra.mxu0 0.0
        %1699 = vmatpush.xpose.msra.mxu0 0.0
        %1700 = vmatpush.xpose.msra.mxu0 %v1652
        %1701 = vmatpush.xpose.msra.mxu0 %v1646
        %1702 = vmatmul.f32.gmra.mxu0 %v419
        %v1703 = vpop.f32.mrf.mxu0
        %v1704 = vadd.f32 %v1684, %v1703
        %1705 = vdwg.mxu0
        %1706 = vmatpush.xpose.msra.mxu0 0.0
        %1707 = vmatpush.xpose.msra.mxu0 0.0
        %1708 = vmatpush.xpose.msra.mxu0 0.0
        %1709 = vmatpush.xpose.msra.mxu0 0.0
        %1710 = vmatpush.xpose.msra.mxu0 0.0
        %1711 = vmatpush.xpose.msra.mxu0 0.0
        %1712 = vmatpush.xpose.msra.mxu0 0.0
        %1713 = vmatpush.xpose.msra.mxu0 0.0
        %1714 = vmatpush.xpose.msra.mxu0 0.0
        %1715 = vmatpush.xpose.msra.mxu0 0.0
        %1716 = vmatpush.xpose.msra.mxu0 0.0
        %1717 = vmatpush.xpose.msra.mxu0 0.0
        %1718 = vmatpush.xpose.msra.mxu0 0.0
        %1719 = vmatpush.xpose.msra.mxu0 0.0
        %1720 = vmatpush.xpose.msra.mxu0 %v1653
        %1721 = vmatpush.xpose.msra.mxu0 %v1647
        %1722 = vmatmul.f32.gmra.mxu0 %v420
        %v1723 = vpop.f32.mrf.mxu0
        %v1724 = vadd.f32 %v1704, %v1723
        %1725 = vdwg.mxu0
        %1726 = vmatpush.xpose.msra.mxu0 0.0
        %1727 = vmatpush.xpose.msra.mxu0 0.0
        %1728 = vmatpush.xpose.msra.mxu0 0.0
        %1729 = vmatpush.xpose.msra.mxu0 0.0
        %1730 = vmatpush.xpose.msra.mxu0 0.0
        %1731 = vmatpush.xpose.msra.mxu0 0.0
        %1732 = vmatpush.xpose.msra.mxu0 0.0
        %1733 = vmatpush.xpose.msra.mxu0 0.0
        %1734 = vmatpush.xpose.msra.mxu0 0.0
        %1735 = vmatpush.xpose.msra.mxu0 0.0
        %1736 = vmatpush.xpose.msra.mxu0 0.0
        %1737 = vmatpush.xpose.msra.mxu0 0.0
        %1738 = vmatpush.xpose.msra.mxu0 0.0
        %1739 = vmatpush.xpose.msra.mxu0 0.0
        %1740 = vmatpush.xpose.msra.mxu0 %v1654
        %1741 = vmatpush.xpose.msra.mxu0 %v1648
        %1742 = vmatmul.f32.gmra.mxu0 %v421
        %v1743 = vpop.f32.mrf.mxu0
        %v1744 = vadd.f32 %v1724, %v1743
        %1745 = vdwg.mxu0
        %1746 = vmatpush.xpose.msra.mxu0 0.0
        %1747 = vmatpush.xpose.msra.mxu0 0.0
        %1748 = vmatpush.xpose.msra.mxu0 0.0
        %1749 = vmatpush.xpose.msra.mxu0 0.0
        %1750 = vmatpush.xpose.msra.mxu0 0.0
        %1751 = vmatpush.xpose.msra.mxu0 0.0
        %1752 = vmatpush.xpose.msra.mxu0 0.0
        %1753 = vmatpush.xpose.msra.mxu0 0.0
        %1754 = vmatpush.xpose.msra.mxu0 0.0
        %1755 = vmatpush.xpose.msra.mxu0 0.0
        %1756 = vmatpush.xpose.msra.mxu0 0.0
        %1757 = vmatpush.xpose.msra.mxu0 0.0
        %1758 = vmatpush.xpose.msra.mxu0 0.0
        %1759 = vmatpush.xpose.msra.mxu0 0.0
        %1760 = vmatpush.xpose.msra.mxu0 %v1655
        %1761 = vmatpush.xpose.msra.mxu0 %v1649
        %1762 = vmatmul.f32.gmra.mxu0 %v422
        %v1763 = vpop.f32.mrf.mxu0
        %v1764 = vadd.f32 %v1744, %v1763
        %1765 = vdwg.mxu0
        %1766 = vmatpush.xpose.msra.mxu0 0.0
        %1767 = vmatpush.xpose.msra.mxu0 0.0
        %1768 = vmatpush.xpose.msra.mxu0 0.0
        %1769 = vmatpush.xpose.msra.mxu0 0.0
        %1770 = vmatpush.xpose.msra.mxu0 0.0
        %1771 = vmatpush.xpose.msra.mxu0 0.0
        %1772 = vmatpush.xpose.msra.mxu0 0.0
        %1773 = vmatpush.xpose.msra.mxu0 0.0
        %1774 = vmatpush.xpose.msra.mxu0 0.0
        %1775 = vmatpush.xpose.msra.mxu0 0.0
        %1776 = vmatpush.xpose.msra.mxu0 0.0
        %1777 = vmatpush.xpose.msra.mxu0 0.0
        %1778 = vmatpush.xpose.msra.mxu0 0.0
        %1779 = vmatpush.xpose.msra.mxu0 0.0
        %1780 = vmatpush.xpose.msra.mxu0 %v1664
        %1781 = vmatpush.xpose.msra.mxu0 %v1661
        %1782 = vmatmul.f32.gmra.mxu0 %v1658
        %v1783 = vpop.f32.mrf.mxu0
        %v1784 = vadd.f32 %v1764, %v1783
        %1785 = vdwg.mxu0
        %v1786 = vadd.f32 %v1643, %v1784
        %s1787 = scalar_lea.vmem %s3, 864
        %v1788 = vld [vmem:[%s1787] sm:$0xff]
        %v1789 = vld [vmem:[%s1787 + $0x8] sm:$0xff]
        %v1790 = vld [vmem:[%s1787 + $0x10] sm:$0xff]
        %v1791 = vld [vmem:[%s1787 + $0x18] sm:$0xff]
        %v1792 = vld [vmem:[%s1787 + $0x20] sm:$0xff]
        %v1793 = vld [vmem:[%s1787 + $0x28] sm:$0xff]
        %v1794 = vld [vmem:[%s1787 + $0x30] sm:$0x3]
        %v1795 = vld [vmem:[%s1787 + $0x38] sm:$0x3]
        %v1796 = vld [vmem:[%s1787 + $0x40] sm:$0x3]
        %v1797 = vld [vmem:[%s1787 + $0x48] sm:$0x3]
        %v1798 = vld [vmem:[%s1787 + $0x50] sm:$0x3]
        %v1799 = vld [vmem:[%s1787 + $0x58] sm:$0x3]
        %v1805 = vrot.slane %v418, 1
        %v1806 = vrot.slane %v419, 1
        %v1807 = vrot.slane %v420, 1
        %v1808 = vrot.slane %v421, 1
        %v1809 = vrot.slane %v422, 1
        %v1810 = vrot.slane %v423, 1
        %v1816 = vsel %vm437, %v1810, 0
        %v1819 = vsel %vm437, %v1793, 0
        %v1822 = vsel %vm437, %v1799, 0
        %1824 = vmatpush.xpose.msra.mxu0 0.0
        %1825 = vmatpush.xpose.msra.mxu0 0.0
        %1826 = vmatpush.xpose.msra.mxu0 0.0
        %1827 = vmatpush.xpose.msra.mxu0 0.0
        %1828 = vmatpush.xpose.msra.mxu0 0.0
        %1829 = vmatpush.xpose.msra.mxu0 0.0
        %1830 = vmatpush.xpose.msra.mxu0 0.0
        %1831 = vmatpush.xpose.msra.mxu0 0.0
        %1832 = vmatpush.xpose.msra.mxu0 0.0
        %1833 = vmatpush.xpose.msra.mxu0 0.0
        %1834 = vmatpush.xpose.msra.mxu0 0.0
        %1835 = vmatpush.xpose.msra.mxu0 0.0
        %1836 = vmatpush.xpose.msra.mxu0 0.0
        %1837 = vmatpush.xpose.msra.mxu0 0.0
        %1838 = vmatpush.xpose.msra.mxu0 %v1794
        %1839 = vmatpush.xpose.msra.mxu0 %v1788
        %1840 = vmatmul.f32.gmra.mxu0 %v1805
        %v1841 = vpop.f32.mrf.mxu0
        %v1842 = vadd.f32 0.0, %v1841
        %1843 = vdwg.mxu0
        %1844 = vmatpush.xpose.msra.mxu0 0.0
        %1845 = vmatpush.xpose.msra.mxu0 0.0
        %1846 = vmatpush.xpose.msra.mxu0 0.0
        %1847 = vmatpush.xpose.msra.mxu0 0.0
        %1848 = vmatpush.xpose.msra.mxu0 0.0
        %1849 = vmatpush.xpose.msra.mxu0 0.0
        %1850 = vmatpush.xpose.msra.mxu0 0.0
        %1851 = vmatpush.xpose.msra.mxu0 0.0
        %1852 = vmatpush.xpose.msra.mxu0 0.0
        %1853 = vmatpush.xpose.msra.mxu0 0.0
        %1854 = vmatpush.xpose.msra.mxu0 0.0
        %1855 = vmatpush.xpose.msra.mxu0 0.0
        %1856 = vmatpush.xpose.msra.mxu0 0.0
        %1857 = vmatpush.xpose.msra.mxu0 0.0
        %1858 = vmatpush.xpose.msra.mxu0 %v1795
        %1859 = vmatpush.xpose.msra.mxu0 %v1789
        %1860 = vmatmul.f32.gmra.mxu0 %v1806
        %v1861 = vpop.f32.mrf.mxu0
        %v1862 = vadd.f32 %v1842, %v1861
        %1863 = vdwg.mxu0
        %1864 = vmatpush.xpose.msra.mxu0 0.0
        %1865 = vmatpush.xpose.msra.mxu0 0.0
        %1866 = vmatpush.xpose.msra.mxu0 0.0
        %1867 = vmatpush.xpose.msra.mxu0 0.0
        %1868 = vmatpush.xpose.msra.mxu0 0.0
        %1869 = vmatpush.xpose.msra.mxu0 0.0
        %1870 = vmatpush.xpose.msra.mxu0 0.0
        %1871 = vmatpush.xpose.msra.mxu0 0.0
        %1872 = vmatpush.xpose.msra.mxu0 0.0
        %1873 = vmatpush.xpose.msra.mxu0 0.0
        %1874 = vmatpush.xpose.msra.mxu0 0.0
        %1875 = vmatpush.xpose.msra.mxu0 0.0
        %1876 = vmatpush.xpose.msra.mxu0 0.0
        %1877 = vmatpush.xpose.msra.mxu0 0.0
        %1878 = vmatpush.xpose.msra.mxu0 %v1796
        %1879 = vmatpush.xpose.msra.mxu0 %v1790
        %1880 = vmatmul.f32.gmra.mxu0 %v1807
        %v1881 = vpop.f32.mrf.mxu0
        %v1882 = vadd.f32 %v1862, %v1881
        %1883 = vdwg.mxu0
        %1884 = vmatpush.xpose.msra.mxu0 0.0
        %1885 = vmatpush.xpose.msra.mxu0 0.0
        %1886 = vmatpush.xpose.msra.mxu0 0.0
        %1887 = vmatpush.xpose.msra.mxu0 0.0
        %1888 = vmatpush.xpose.msra.mxu0 0.0
        %1889 = vmatpush.xpose.msra.mxu0 0.0
        %1890 = vmatpush.xpose.msra.mxu0 0.0
        %1891 = vmatpush.xpose.msra.mxu0 0.0
        %1892 = vmatpush.xpose.msra.mxu0 0.0
        %1893 = vmatpush.xpose.msra.mxu0 0.0
        %1894 = vmatpush.xpose.msra.mxu0 0.0
        %1895 = vmatpush.xpose.msra.mxu0 0.0
        %1896 = vmatpush.xpose.msra.mxu0 0.0
        %1897 = vmatpush.xpose.msra.mxu0 0.0
        %1898 = vmatpush.xpose.msra.mxu0 %v1797
        %1899 = vmatpush.xpose.msra.mxu0 %v1791
        %1900 = vmatmul.f32.gmra.mxu0 %v1808
        %v1901 = vpop.f32.mrf.mxu0
        %v1902 = vadd.f32 %v1882, %v1901
        %1903 = vdwg.mxu0
        %1904 = vmatpush.xpose.msra.mxu0 0.0
        %1905 = vmatpush.xpose.msra.mxu0 0.0
        %1906 = vmatpush.xpose.msra.mxu0 0.0
        %1907 = vmatpush.xpose.msra.mxu0 0.0
        %1908 = vmatpush.xpose.msra.mxu0 0.0
        %1909 = vmatpush.xpose.msra.mxu0 0.0
        %1910 = vmatpush.xpose.msra.mxu0 0.0
        %1911 = vmatpush.xpose.msra.mxu0 0.0
        %1912 = vmatpush.xpose.msra.mxu0 0.0
        %1913 = vmatpush.xpose.msra.mxu0 0.0
        %1914 = vmatpush.xpose.msra.mxu0 0.0
        %1915 = vmatpush.xpose.msra.mxu0 0.0
        %1916 = vmatpush.xpose.msra.mxu0 0.0
        %1917 = vmatpush.xpose.msra.mxu0 0.0
        %1918 = vmatpush.xpose.msra.mxu0 %v1798
        %1919 = vmatpush.xpose.msra.mxu0 %v1792
        %1920 = vmatmul.f32.gmra.mxu0 %v1809
        %v1921 = vpop.f32.mrf.mxu0
        %v1922 = vadd.f32 %v1902, %v1921
        %1923 = vdwg.mxu0
        %1924 = vmatpush.xpose.msra.mxu0 0.0
        %1925 = vmatpush.xpose.msra.mxu0 0.0
        %1926 = vmatpush.xpose.msra.mxu0 0.0
        %1927 = vmatpush.xpose.msra.mxu0 0.0
        %1928 = vmatpush.xpose.msra.mxu0 0.0
        %1929 = vmatpush.xpose.msra.mxu0 0.0
        %1930 = vmatpush.xpose.msra.mxu0 0.0
        %1931 = vmatpush.xpose.msra.mxu0 0.0
        %1932 = vmatpush.xpose.msra.mxu0 0.0
        %1933 = vmatpush.xpose.msra.mxu0 0.0
        %1934 = vmatpush.xpose.msra.mxu0 0.0
        %1935 = vmatpush.xpose.msra.mxu0 0.0
        %1936 = vmatpush.xpose.msra.mxu0 0.0
        %1937 = vmatpush.xpose.msra.mxu0 0.0
        %1938 = vmatpush.xpose.msra.mxu0 %v1822
        %1939 = vmatpush.xpose.msra.mxu0 %v1819
        %1940 = vmatmul.f32.gmra.mxu0 %v1816
        %v1941 = vpop.f32.mrf.mxu0
        %v1942 = vadd.f32 %v1922, %v1941
        %1943 = vdwg.mxu0
        %v1944 = vadd.f32 %v1786, %v1942
        %vm1945 = vcmask 73728
        %v1946 = vsel %vm1945, %v1944, -inf
        %1947 = vmax.xlane.f32.xlu0 %v1946
        %v1948 = vpop.xlane.xlu0 %1947
        %v1949 = vsub.f32 %v1944, %v1948
        %v1950 = vmul.f32 %v1949, 1.442695
        %v1951 = vpow.pop %v1950
        %v1952 = vsel %vm1945, %v1951, 0.0
        %1953 = vadd.xlane.f32.xlu0 %v1952
        %v1954 = vpop.xlane.xlu0 %1953
        %v1955 = vrcp.pop %v1954
        %v1956 = vmul.f32 %v1954, %v1955
        %v1957 = vsub.f32 1.0, %v1956
        %v1958 = vmul.f32 %v1955, %v1957
        %v1959 = vadd.f32 %v1955, %v1958
        %vm1960 = vweird.f32 %v1954
        %vm1961 = vweird.f32 %v1955
        %vm1962 = vmor %vm1960, %vm1961
        %v1963 = vsel %vm1962, %v1955, %v1959
        %v1964 = vand.u32 2147483647, %v1954
        %vm1965 = vcmp.eq.f32.partialorder %v1964, 8.507059e+37
        %v1966 = vand.u32 %v1954, 2147483648
        %v1967 = vor.u32 1.1754944e-38, %v1966
        %v1968 = vsel %vm1965, %v1967, %v1963
        %v1969 = vmul.f32 %v1951, %v1968
        %1970 = vst.msk [vmem:[%s216] sm:$0x1] %vm1945, %v1969
        %s1971 = sand.u32 %s137, 1
        %s1972 = scalar_lea.sflag [#allocation3], %s1971
        %s1973 = sand.u32 %s137, 1
        %s1974 = scalar_lea.vmem [#allocation2], %s1973
        // Predicated region
        $region41: #{abc_net_forward.1} parent=39 // pred_check
          %p1975 = pneg %p147
        $region42: #{abc_net_forward.1} parent=39 // pred_check_branch
          %1977 = sbr.rel (%p1975) target = $region44
        $region43: #{abc_net_forward.1} parent=39 // pred_region
          %1979 = vsyncadd %s1972, 0
          %s1980 = scalar_lea.hbm %s5, %s19
          %s1982 = sshll.u32 %s1974, 4
          %s1983 = int_to_ptr.vmem [resolvable:$true] %s1982
          %s1984 = sshll.u32 %s1980, 4
          %s1985 = int_to_ptr.hbm [resolvable:$true] %s1984
          %1987 = dma.vmem_to_hbm [thread:$0]  %s1983, 16, %s1985, %s1972
        $region44: #{abc_net_forward.1} parent=39 // pred_fallthru
          _
      $region40: #{abc_net_forward.1} parent=5 // pred_fallthru
        _
      %p1988 = scmp.le.s32.totalorder 2, %s14
      // Predicated region
      $region45: #{abc_net_forward.1} parent=5 // pred_check
        %p1989 = pneg %p1988
      $region46: #{abc_net_forward.1} parent=5 // pred_check_branch
        %1991 = sbr.rel (%p1989) target = $region48
      $region47: #{abc_net_forward.1} parent=5 // pred_region
        %s1992 = ssub.s32 %s14, 2
        // Predicated region
        $region49: #{abc_net_forward.1} parent=47 // pred_check
          %p1993 = pneg %p153
        $region50: #{abc_net_forward.1} parent=47 // pred_check_branch
          %1995 = sbr.rel (%p1993) target = $region52
        $region51: #{abc_net_forward.1} parent=47 // pred_region
          %s1996 = sand.u32 %s138, 1
          %s1997 = scalar_lea.sflag [#allocation3], %s1996
          %s1998 = sand.u32 %s138, 1
          %s1999 = scalar_lea.vmem [#allocation2], %s1998
          %2001 = dma.done %s1997, 16
        $region52: #{abc_net_forward.1} parent=47 // pred_fallthru
          _
      $region48: #{abc_net_forward.1} parent=5 // pred_fallthru
        _
    $region6: #{abc_net_forward.1} parent=1 // loop_footer
      %s18 = sadd.s32 1, %s14
    $region7: #{abc_net_forward.1} parent=1 // loop_footer_branch
      %13 = sbr.rel target = $region3
    $region8: #{abc_net_forward.1} parent=1 // loop_exit
      _
    %2002 = vsyncpa [#allocation3], 1
    %s2003 = scalar_lea.sflag [#allocation3], 1
    %2004 = vsyncpa %s2003, 1

</llo_original>
